<compile_context>
chip_gen: v6e
topology: v6e:2x2x1
jax: 0.10.0
libtpu: 0.0.40
codegen_flags: <defaults>
</compile_context>

<pallas_src>
import jax
import jax.numpy as jnp
from jax.experimental import pallas as pl
from jax.experimental.pallas import tpu as pltpu

# ---- model hyper-parameters (small, consistent with the module) -------------
EMB = 32                      # emb
HEADS = 4                     # heads
SEQ = 8                       # seq_length / t
HEAD_DIM = EMB // HEADS       # s = emb // heads
FF = 4 * EMB                  # ff_hidden_mult * emb
LN_EPS = 1e-5                 # nn.LayerNorm default eps


def _layer_norm(x, gamma, beta):
    mean = jnp.mean(x, axis=-1, keepdims=True)
    var = jnp.mean((x - mean) ** 2, axis=-1, keepdims=True)
    return (x - mean) * jax.lax.rsqrt(var + LN_EPS) * gamma + beta


def transformer_block_kernel(
    x_ref,                # (R, EMB), R = tb*SEQ   flattened batch tile
    wqkv_ref,             # (EMB, 3*EMB)  fused block-diag QKV, pre-transposed, pre-scaled
    wp_ref,               # (EMB, EMB)    project_heads weight, pre-transposed
    bp_ref,               # (1, EMB)
    g1_ref, bln1_ref,     # (1, EMB) LayerNorm1 gamma / beta
    w1_ref,               # (EMB, FF)     FFN weight 1, pre-transposed
    b1_ref,               # (1, FF)
    w2_ref,               # (FF, EMB)     FFN weight 2, pre-transposed
    b2_ref,               # (1, EMB)
    g2_ref, bln2_ref,     # (1, EMB) LayerNorm2 gamma / beta
    o_ref,                # (R, EMB) float32
):
    x = x_ref[...]                         # (R, E) in compute dtype
    R = x.shape[0]
    tb = R // SEQ
    s = HEAD_DIM
    cdt = x.dtype                          # matmul operand dtype (f32 default, bf16 optional)
    x_f32 = x.astype(jnp.float32)

    # --- fused Q/K/V projection for every head: one big MXU matmul -----------
    qkv = jnp.dot(x, wqkv_ref[...], preferred_element_type=jnp.float32)   # (R, 3E) f32
    qkv3 = qkv.reshape(tb, SEQ, 3 * EMB).astype(cdt)                      # (tb, t, 3E)

    # --- attention, batched over the whole batch tile per head ---------------
    proj = None
    for hh in range(HEADS):                # static 4-iteration loop
        lo = hh * s
        q_h = qkv3[:, :, lo:lo + s]                        # (tb, t, s), scale pre-folded
        k_h = qkv3[:, :, EMB + lo:EMB + lo + s]            # (tb, t, s), scale pre-folded
        v_h = qkv3[:, :, 2 * EMB + lo:2 * EMB + lo + s]    # (tb, t, s)

        scores = jnp.einsum('bqs,bks->bqk', q_h, k_h,
                            preferred_element_type=jnp.float32)           # (tb, t, t)
        scores = scores - jnp.max(scores, axis=-1, keepdims=True)
        p = jnp.exp(scores)
        p = p * pl.reciprocal(jnp.sum(p, axis=-1, keepdims=True), approx=True)

        out_h = jnp.einsum('bqk,bks->bqs', p.astype(cdt), v_h,
                           preferred_element_type=jnp.float32)            # (tb, t, s)
        out_h2 = out_h.reshape(R, s).astype(cdt)

        # head projection: row-slice of pre-transposed project_heads weight,
        # accumulated across heads (equivalent to concat(heads) @ Wp.T, no lane concat).
        ph = jnp.dot(out_h2, wp_ref[lo:lo + s, :],
                     preferred_element_type=jnp.float32)                  # (R, E)
        proj = ph if proj is None else proj + ph

    attended = proj + bp_ref[...]                                         # (R, E) f32

    # --- residual + LayerNorm 1 (dropout = 0.0 -> identity) ------------------
    y1 = _layer_norm(attended + x_f32, g1_ref[...], bln1_ref[...])

    # --- feed-forward: Linear -> ReLU -> Linear -------------------------------
    hidden = jnp.dot(y1.astype(cdt), w1_ref[...],
                     preferred_element_type=jnp.float32) + b1_ref[...]
    hidden = jnp.maximum(hidden, 0.0)
    ff = jnp.dot(hidden.astype(cdt), w2_ref[...],
                 preferred_element_type=jnp.float32) + b2_ref[...]

    # --- residual + LayerNorm 2 -----------------------------------------------
    o_ref[...] = _layer_norm(ff + y1, g2_ref[...], bln2_ref[...]).astype(o_ref.dtype)


def transformer_block(x, params, *, tb=256, compute_dtype=jnp.float32):
    """x: (b, SEQ, EMB) float32.  tb = samples per grid step (clamped to b).
    compute_dtype: matmul operand dtype; use jnp.bfloat16 on v6e/v7x for full MXU rate."""
    b, t, e = x.shape
    assert (t, e) == (SEQ, EMB)

    tb = max(1, min(tb, b))            # on v7x pick tb <= b//2 so both TCs get grid steps
    nb = pl.cdiv(b, tb)
    pb = nb * tb
    rows = tb * SEQ

    # Flatten to 2-D sublane-dense rows; pad batch up to a tile multiple.
    x2 = x.reshape(b * SEQ, EMB).astype(jnp.float32)
    if pb != b:
        x2 = jnp.pad(x2, ((0, (pb - b) * SEQ), (0, 0)))
    x2 = x2.astype(compute_dtype)

    # --- host-side weight preparation (done once, outside the grid) ----------
    scale = 1.0 / (EMB ** 0.25)        # q and k are each scaled by e**-1/4
    eye_h = jnp.eye(HEADS, dtype=jnp.float32)
    w_qkv = jnp.concatenate(
        [jnp.kron(eye_h, params["wq"].T) * scale,
         jnp.kron(eye_h, params["wk"].T) * scale,
         jnp.kron(eye_h, params["wv"].T)],
        axis=1).astype(compute_dtype)                       # (EMB, 3*EMB) block-diagonal
    wpT = params["wp"].T.astype(compute_dtype)              # (EMB, EMB)
    w1T = params["w1"].T.astype(compute_dtype)              # (EMB, FF)
    w2T = params["w2"].T.astype(compute_dtype)              # (FF, EMB)

    weight_args = [
        w_qkv, wpT, params["bp"],
        params["g1"], params["bln1"],
        w1T, params["b1"],
        w2T, params["b2"],
        params["g2"], params["bln2"],
    ]

    def full_spec(a):
        nd = a.ndim
        return pl.BlockSpec(a.shape, lambda i, _nd=nd: (0,) * _nd)

    in_specs = [pl.BlockSpec((rows, EMB), lambda i: (i, 0))]
    in_specs += [full_spec(a) for a in weight_args]

    # advisory cost estimate for XLA scheduling
    total_rows = pb * SEQ
    flops = (2 * total_rows * EMB * 3 * EMB                  # fused QKV
             + 2 * pb * HEADS * SEQ * SEQ * HEAD_DIM * 2     # scores + AV
             + 2 * total_rows * EMB * EMB                    # head projection
             + 4 * total_rows * EMB * FF)                    # FFN (two matmuls)
    bytes_accessed = (int(x2.size) * x2.dtype.itemsize
                      + total_rows * EMB * 4
                      + sum(int(a.size) * a.dtype.itemsize for a in weight_args))
    cost = pl.CostEstimate(flops=int(flops),
                           transcendentals=int(pb * HEADS * SEQ * SEQ),
                           bytes_accessed=int(bytes_accessed))

    out2 = pl.pallas_call(
        transformer_block_kernel,
        out_shape=jax.ShapeDtypeStruct((total_rows, EMB), jnp.float32),
        grid_spec=pltpu.PrefetchScalarGridSpec(
            num_scalar_prefetch=0,
            grid=(nb,),
            in_specs=in_specs,
            out_specs=pl.BlockSpec((rows, EMB), lambda i: (i, 0)),
        ),
        compiler_params=pltpu.CompilerParams(
            dimension_semantics=("parallel",)),
        cost_estimate=cost,
    )(x2, *weight_args)

    return out2[: b * SEQ].reshape(b, SEQ, EMB)


def init_params(seed=42):
    key = jax.random.PRNGKey(seed)
    ks = jax.random.split(key, 8)

    def rnd(k, shape, scale=0.05):
        return (jax.random.normal(k, shape, jnp.float32) * scale).astype(jnp.float32)

    s = HEAD_DIM
    return {
        # SelfAttention (PyTorch Linear weights, y = x @ W.T)
        "wq": rnd(ks[0], (s, s)),
        "wk": rnd(ks[1], (s, s)),
        "wv": rnd(ks[2], (s, s)),
        "wp": rnd(ks[3], (EMB, HEADS * s)),
        "bp": rnd(ks[4], (1, EMB)),
        # LayerNorm 1 (default init: gamma=1, beta=0)
        "g1": jnp.ones((1, EMB), jnp.float32),
        "bln1": jnp.zeros((1, EMB), jnp.float32),
        # FeedForward
        "w1": rnd(ks[5], (FF, EMB)),
        "b1": rnd(ks[6], (1, FF)),
        "w2": rnd(ks[7], (EMB, FF)),
        "b2": jnp.zeros((1, EMB), jnp.float32),
        # LayerNorm 2
        "g2": jnp.ones((1, EMB), jnp.float32),
        "bln2": jnp.zeros((1, EMB), jnp.float32),
    }


if __name__ == "__main__":
    params = init_params()

    # small deterministic check (batch=2) — tb clamps to the batch
    x = jax.random.normal(jax.random.PRNGKey(0), (2, SEQ, EMB), jnp.float32)
    out = jax.block_until_ready(transformer_block(x, params))
    assert out.shape == (2, SEQ, EMB)
    assert jnp.all(jnp.isfinite(out))

    # exercise the multi-tile grid + batch-padding path
    x_big = jax.random.normal(jax.random.PRNGKey(1), (6, SEQ, EMB), jnp.float32)
    out_big = jax.block_until_ready(transformer_block(x_big, params, tb=4))
    assert out_big.shape == (6, SEQ, EMB)
    assert jnp.all(jnp.isfinite(out_big))

    print("KERNEL_OK")
</pallas_src>

<mosaic_0001>
module attributes {stable_mosaic.version = 11 : i64} {
  func.func @transformer_block_kernel(%arg0: i32, %arg1: memref<16x32xf32, #tpu.memory_space<vmem>>, %arg2: memref<32x96xf32, #tpu.memory_space<vmem>>, %arg3: memref<32x32xf32, #tpu.memory_space<vmem>>, %arg4: memref<1x32xf32, #tpu.memory_space<vmem>>, %arg5: memref<1x32xf32, #tpu.memory_space<vmem>>, %arg6: memref<1x32xf32, #tpu.memory_space<vmem>>, %arg7: memref<32x128xf32, #tpu.memory_space<vmem>>, %arg8: memref<1x128xf32, #tpu.memory_space<vmem>>, %arg9: memref<128x32xf32, #tpu.memory_space<vmem>>, %arg10: memref<1x32xf32, #tpu.memory_space<vmem>>, %arg11: memref<1x32xf32, #tpu.memory_space<vmem>>, %arg12: memref<1x32xf32, #tpu.memory_space<vmem>>, %arg13: memref<16x32xf32, #tpu.memory_space<vmem>>) attributes {dimension_semantics = [#tpu.dimension_semantics<parallel>], iteration_bounds = array<i64: 1>, scalar_prefetch = 0 : i64, scratch_operands = 0 : i64, tpu.core_type = #tpu.core_type<tc>, window_params = [{transform_indices = @transform_0, window_bounds = array<i64: 16, 32>}, {pipeline_mode = #tpu.pipeline_mode<synchronous>, transform_indices = @transform_1, window_bounds = array<i64: 32, 96>}, {pipeline_mode = #tpu.pipeline_mode<synchronous>, transform_indices = @transform_2, window_bounds = array<i64: 32, 32>}, {pipeline_mode = #tpu.pipeline_mode<synchronous>, transform_indices = @transform_3, window_bounds = array<i64: 1, 32>}, {pipeline_mode = #tpu.pipeline_mode<synchronous>, transform_indices = @transform_4, window_bounds = array<i64: 1, 32>}, {pipeline_mode = #tpu.pipeline_mode<synchronous>, transform_indices = @transform_5, window_bounds = array<i64: 1, 32>}, {pipeline_mode = #tpu.pipeline_mode<synchronous>, transform_indices = @transform_6, window_bounds = array<i64: 32, 128>}, {pipeline_mode = #tpu.pipeline_mode<synchronous>, transform_indices = @transform_7, window_bounds = array<i64: 1, 128>}, {pipeline_mode = #tpu.pipeline_mode<synchronous>, transform_indices = @transform_8, window_bounds = array<i64: 128, 32>}, {pipeline_mode = #tpu.pipeline_mode<synchronous>, transform_indices = @transform_9, window_bounds = array<i64: 1, 32>}, {pipeline_mode = #tpu.pipeline_mode<synchronous>, transform_indices = @transform_10, window_bounds = array<i64: 1, 32>}, {pipeline_mode = #tpu.pipeline_mode<synchronous>, transform_indices = @transform_11, window_bounds = array<i64: 1, 32>}, {transform_indices = @transform_12, window_bounds = array<i64: 16, 32>}]} {
    %c0 = arith.constant 0 : index
    %c0_0 = arith.constant 0 : index
    %0 = vector.load %arg1[%c0, %c0_0] : memref<16x32xf32, #tpu.memory_space<vmem>>, vector<16x32xf32>
    %c0_1 = arith.constant 0 : index
    %c0_2 = arith.constant 0 : index
    %1 = vector.load %arg2[%c0_1, %c0_2] : memref<32x96xf32, #tpu.memory_space<vmem>>, vector<32x96xf32>
    %cst = arith.constant dense<0.000000e+00> : vector<16x96xf32>
    %2 = tpu.matmul %0, %1, %cst {dimension_numbers = #tpu.dot_dimension_numbers<[1], [0], [0], [1], [0, 0, 1, 1], [], []>} : vector<16x32xf32>, vector<32x96xf32>, vector<16x96xf32> -> vector<16x96xf32>
    %3 = vector.shape_cast %2 : vector<16x96xf32> to vector<2x8x96xf32>
    %4 = vector.extract_strided_slice %3 {offsets = [0, 0, 0], sizes = [2, 8, 8], strides = [1, 1, 1]} : vector<2x8x96xf32> to vector<2x8x8xf32>
    %5 = vector.extract_strided_slice %3 {offsets = [0, 0, 32], sizes = [2, 8, 8], strides = [1, 1, 1]} : vector<2x8x96xf32> to vector<2x8x8xf32>
    %6 = vector.extract_strided_slice %3 {offsets = [0, 0, 64], sizes = [2, 8, 8], strides = [1, 1, 1]} : vector<2x8x96xf32> to vector<2x8x8xf32>
    "tpu.trace_start"() <{level = 10 : i32, message = "bqs,bks->bqk"}> : () -> ()
    %cst_3 = arith.constant dense<0.000000e+00> : vector<2x8x8xf32>
    %7 = tpu.matmul %4, %5, %cst_3 {dimension_numbers = #tpu.dot_dimension_numbers<[2], [2], [1], [1], [0, 0, 0, 1, 1, 1], [0], [0]>} : vector<2x8x8xf32>, vector<2x8x8xf32>, vector<2x8x8xf32> -> vector<2x8x8xf32>
    "tpu.trace_stop"() : () -> ()
    %cst_4 = arith.constant dense<0xFF800000> : vector<2x8xf32>
    %8 = vector.multi_reduction <maximumf>, %7, %cst_4 [2] : vector<2x8x8xf32> to vector<2x8xf32>
    %9 = vector.shape_cast %8 : vector<2x8xf32> to vector<2x8x1xf32>
    %10 = vector.broadcast %9 : vector<2x8x1xf32> to vector<2x8x8xf32>
    %11 = arith.subf %7, %10 : vector<2x8x8xf32>
    %12 = math.exp %11 : vector<2x8x8xf32>
    %cst_5 = arith.constant dense<0.000000e+00> : vector<2x8xf32>
    %13 = vector.multi_reduction <add>, %12, %cst_5 [2] : vector<2x8x8xf32> to vector<2x8xf32>
    %14 = vector.shape_cast %13 : vector<2x8xf32> to vector<2x8x1xf32>
    %15 = tpu.reciprocal %14 {approx = true} : vector<2x8x1xf32> -> vector<2x8x1xf32>
    %16 = vector.broadcast %15 : vector<2x8x1xf32> to vector<2x8x8xf32>
    %17 = arith.mulf %12, %16 : vector<2x8x8xf32>
    "tpu.trace_start"() <{level = 10 : i32, message = "bqk,bks->bqs"}> : () -> ()
    %cst_6 = arith.constant dense<0.000000e+00> : vector<2x8x8xf32>
    %18 = tpu.matmul %17, %6, %cst_6 {dimension_numbers = #tpu.dot_dimension_numbers<[2], [1], [1], [2], [0, 0, 0, 1, 1, 2], [0], [0]>} : vector<2x8x8xf32>, vector<2x8x8xf32>, vector<2x8x8xf32> -> vector<2x8x8xf32>
    "tpu.trace_stop"() : () -> ()
    %19 = vector.shape_cast %18 : vector<2x8x8xf32> to vector<16x8xf32>
    %c0_7 = arith.constant 0 : index
    %c0_8 = arith.constant 0 : index
    %20 = vector.load %arg3[%c0_7, %c0_8] : memref<32x32xf32, #tpu.memory_space<vmem>>, vector<8x32xf32>
    %cst_9 = arith.constant dense<0.000000e+00> : vector<16x32xf32>
    %21 = tpu.matmul %19, %20, %cst_9 {dimension_numbers = #tpu.dot_dimension_numbers<[1], [0], [0], [1], [0, 0, 1, 1], [], []>} : vector<16x8xf32>, vector<8x32xf32>, vector<16x32xf32> -> vector<16x32xf32>
    %22 = vector.extract_strided_slice %3 {offsets = [0, 0, 8], sizes = [2, 8, 8], strides = [1, 1, 1]} : vector<2x8x96xf32> to vector<2x8x8xf32>
    %23 = vector.extract_strided_slice %3 {offsets = [0, 0, 40], sizes = [2, 8, 8], strides = [1, 1, 1]} : vector<2x8x96xf32> to vector<2x8x8xf32>
    %24 = vector.extract_strided_slice %3 {offsets = [0, 0, 72], sizes = [2, 8, 8], strides = [1, 1, 1]} : vector<2x8x96xf32> to vector<2x8x8xf32>
    "tpu.trace_start"() <{level = 10 : i32, message = "bqs,bks->bqk"}> : () -> ()
    %cst_10 = arith.constant dense<0.000000e+00> : vector<2x8x8xf32>
    %25 = tpu.matmul %22, %23, %cst_10 {dimension_numbers = #tpu.dot_dimension_numbers<[2], [2], [1], [1], [0, 0, 0, 1, 1, 1], [0], [0]>} : vector<2x8x8xf32>, vector<2x8x8xf32>, vector<2x8x8xf32> -> vector<2x8x8xf32>
    "tpu.trace_stop"() : () -> ()
    %cst_11 = arith.constant dense<0xFF800000> : vector<2x8xf32>
    %26 = vector.multi_reduction <maximumf>, %25, %cst_11 [2] : vector<2x8x8xf32> to vector<2x8xf32>
    %27 = vector.shape_cast %26 : vector<2x8xf32> to vector<2x8x1xf32>
    %28 = vector.broadcast %27 : vector<2x8x1xf32> to vector<2x8x8xf32>
    %29 = arith.subf %25, %28 : vector<2x8x8xf32>
    %30 = math.exp %29 : vector<2x8x8xf32>
    %cst_12 = arith.constant dense<0.000000e+00> : vector<2x8xf32>
    %31 = vector.multi_reduction <add>, %30, %cst_12 [2] : vector<2x8x8xf32> to vector<2x8xf32>
    %32 = vector.shape_cast %31 : vector<2x8xf32> to vector<2x8x1xf32>
    %33 = tpu.reciprocal %32 {approx = true} : vector<2x8x1xf32> -> vector<2x8x1xf32>
    %34 = vector.broadcast %33 : vector<2x8x1xf32> to vector<2x8x8xf32>
    %35 = arith.mulf %30, %34 : vector<2x8x8xf32>
    "tpu.trace_start"() <{level = 10 : i32, message = "bqk,bks->bqs"}> : () -> ()
    %cst_13 = arith.constant dense<0.000000e+00> : vector<2x8x8xf32>
    %36 = tpu.matmul %35, %24, %cst_13 {dimension_numbers = #tpu.dot_dimension_numbers<[2], [1], [1], [2], [0, 0, 0, 1, 1, 2], [0], [0]>} : vector<2x8x8xf32>, vector<2x8x8xf32>, vector<2x8x8xf32> -> vector<2x8x8xf32>
    "tpu.trace_stop"() : () -> ()
    %37 = vector.shape_cast %36 : vector<2x8x8xf32> to vector<16x8xf32>
    %c8 = arith.constant 8 : index
    %c0_14 = arith.constant 0 : index
    %38 = vector.load %arg3[%c8, %c0_14] : memref<32x32xf32, #tpu.memory_space<vmem>>, vector<8x32xf32>
    %cst_15 = arith.constant dense<0.000000e+00> : vector<16x32xf32>
    %39 = tpu.matmul %37, %38, %cst_15 {dimension_numbers = #tpu.dot_dimension_numbers<[1], [0], [0], [1], [0, 0, 1, 1], [], []>} : vector<16x8xf32>, vector<8x32xf32>, vector<16x32xf32> -> vector<16x32xf32>
    %40 = arith.addf %21, %39 : vector<16x32xf32>
    %41 = vector.extract_strided_slice %3 {offsets = [0, 0, 16], sizes = [2, 8, 8], strides = [1, 1, 1]} : vector<2x8x96xf32> to vector<2x8x8xf32>
    %42 = vector.extract_strided_slice %3 {offsets = [0, 0, 48], sizes = [2, 8, 8], strides = [1, 1, 1]} : vector<2x8x96xf32> to vector<2x8x8xf32>
    %43 = vector.extract_strided_slice %3 {offsets = [0, 0, 80], sizes = [2, 8, 8], strides = [1, 1, 1]} : vector<2x8x96xf32> to vector<2x8x8xf32>
    "tpu.trace_start"() <{level = 10 : i32, message = "bqs,bks->bqk"}> : () -> ()
    %cst_16 = arith.constant dense<0.000000e+00> : vector<2x8x8xf32>
    %44 = tpu.matmul %41, %42, %cst_16 {dimension_numbers = #tpu.dot_dimension_numbers<[2], [2], [1], [1], [0, 0, 0, 1, 1, 1], [0], [0]>} : vector<2x8x8xf32>, vector<2x8x8xf32>, vector<2x8x8xf32> -> vector<2x8x8xf32>
    "tpu.trace_stop"() : () -> ()
    %cst_17 = arith.constant dense<0xFF800000> : vector<2x8xf32>
    %45 = vector.multi_reduction <maximumf>, %44, %cst_17 [2] : vector<2x8x8xf32> to vector<2x8xf32>
    %46 = vector.shape_cast %45 : vector<2x8xf32> to vector<2x8x1xf32>
    %47 = vector.broadcast %46 : vector<2x8x1xf32> to vector<2x8x8xf32>
    %48 = arith.subf %44, %47 : vector<2x8x8xf32>
    %49 = math.exp %48 : vector<2x8x8xf32>
    %cst_18 = arith.constant dense<0.000000e+00> : vector<2x8xf32>
    %50 = vector.multi_reduction <add>, %49, %cst_18 [2] : vector<2x8x8xf32> to vector<2x8xf32>
    %51 = vector.shape_cast %50 : vector<2x8xf32> to vector<2x8x1xf32>
    %52 = tpu.reciprocal %51 {approx = true} : vector<2x8x1xf32> -> vector<2x8x1xf32>
    %53 = vector.broadcast %52 : vector<2x8x1xf32> to vector<2x8x8xf32>
    %54 = arith.mulf %49, %53 : vector<2x8x8xf32>
    "tpu.trace_start"() <{level = 10 : i32, message = "bqk,bks->bqs"}> : () -> ()
    %cst_19 = arith.constant dense<0.000000e+00> : vector<2x8x8xf32>
    %55 = tpu.matmul %54, %43, %cst_19 {dimension_numbers = #tpu.dot_dimension_numbers<[2], [1], [1], [2], [0, 0, 0, 1, 1, 2], [0], [0]>} : vector<2x8x8xf32>, vector<2x8x8xf32>, vector<2x8x8xf32> -> vector<2x8x8xf32>
    "tpu.trace_stop"() : () -> ()
    %56 = vector.shape_cast %55 : vector<2x8x8xf32> to vector<16x8xf32>
    %c16 = arith.constant 16 : index
    %c0_20 = arith.constant 0 : index
    %57 = vector.load %arg3[%c16, %c0_20] : memref<32x32xf32, #tpu.memory_space<vmem>>, vector<8x32xf32>
    %cst_21 = arith.constant dense<0.000000e+00> : vector<16x32xf32>
    %58 = tpu.matmul %56, %57, %cst_21 {dimension_numbers = #tpu.dot_dimension_numbers<[1], [0], [0], [1], [0, 0, 1, 1], [], []>} : vector<16x8xf32>, vector<8x32xf32>, vector<16x32xf32> -> vector<16x32xf32>
    %59 = arith.addf %40, %58 : vector<16x32xf32>
    %60 = vector.extract_strided_slice %3 {offsets = [0, 0, 24], sizes = [2, 8, 8], strides = [1, 1, 1]} : vector<2x8x96xf32> to vector<2x8x8xf32>
    %61 = vector.extract_strided_slice %3 {offsets = [0, 0, 56], sizes = [2, 8, 8], strides = [1, 1, 1]} : vector<2x8x96xf32> to vector<2x8x8xf32>
    %62 = vector.extract_strided_slice %3 {offsets = [0, 0, 88], sizes = [2, 8, 8], strides = [1, 1, 1]} : vector<2x8x96xf32> to vector<2x8x8xf32>
    "tpu.trace_start"() <{level = 10 : i32, message = "bqs,bks->bqk"}> : () -> ()
    %cst_22 = arith.constant dense<0.000000e+00> : vector<2x8x8xf32>
    %63 = tpu.matmul %60, %61, %cst_22 {dimension_numbers = #tpu.dot_dimension_numbers<[2], [2], [1], [1], [0, 0, 0, 1, 1, 1], [0], [0]>} : vector<2x8x8xf32>, vector<2x8x8xf32>, vector<2x8x8xf32> -> vector<2x8x8xf32>
    "tpu.trace_stop"() : () -> ()
    %cst_23 = arith.constant dense<0xFF800000> : vector<2x8xf32>
    %64 = vector.multi_reduction <maximumf>, %63, %cst_23 [2] : vector<2x8x8xf32> to vector<2x8xf32>
    %65 = vector.shape_cast %64 : vector<2x8xf32> to vector<2x8x1xf32>
    %66 = vector.broadcast %65 : vector<2x8x1xf32> to vector<2x8x8xf32>
    %67 = arith.subf %63, %66 : vector<2x8x8xf32>
    %68 = math.exp %67 : vector<2x8x8xf32>
    %cst_24 = arith.constant dense<0.000000e+00> : vector<2x8xf32>
    %69 = vector.multi_reduction <add>, %68, %cst_24 [2] : vector<2x8x8xf32> to vector<2x8xf32>
    %70 = vector.shape_cast %69 : vector<2x8xf32> to vector<2x8x1xf32>
    %71 = tpu.reciprocal %70 {approx = true} : vector<2x8x1xf32> -> vector<2x8x1xf32>
    %72 = vector.broadcast %71 : vector<2x8x1xf32> to vector<2x8x8xf32>
    %73 = arith.mulf %68, %72 : vector<2x8x8xf32>
    "tpu.trace_start"() <{level = 10 : i32, message = "bqk,bks->bqs"}> : () -> ()
    %cst_25 = arith.constant dense<0.000000e+00> : vector<2x8x8xf32>
    %74 = tpu.matmul %73, %62, %cst_25 {dimension_numbers = #tpu.dot_dimension_numbers<[2], [1], [1], [2], [0, 0, 0, 1, 1, 2], [0], [0]>} : vector<2x8x8xf32>, vector<2x8x8xf32>, vector<2x8x8xf32> -> vector<2x8x8xf32>
    "tpu.trace_stop"() : () -> ()
    %75 = vector.shape_cast %74 : vector<2x8x8xf32> to vector<16x8xf32>
    %c24 = arith.constant 24 : index
    %c0_26 = arith.constant 0 : index
    %76 = vector.load %arg3[%c24, %c0_26] : memref<32x32xf32, #tpu.memory_space<vmem>>, vector<8x32xf32>
    %cst_27 = arith.constant dense<0.000000e+00> : vector<16x32xf32>
    %77 = tpu.matmul %75, %76, %cst_27 {dimension_numbers = #tpu.dot_dimension_numbers<[1], [0], [0], [1], [0, 0, 1, 1], [], []>} : vector<16x8xf32>, vector<8x32xf32>, vector<16x32xf32> -> vector<16x32xf32>
    %78 = arith.addf %59, %77 : vector<16x32xf32>
    %c0_28 = arith.constant 0 : index
    %c0_29 = arith.constant 0 : index
    %79 = vector.load %arg4[%c0_28, %c0_29] : memref<1x32xf32, #tpu.memory_space<vmem>>, vector<1x32xf32>
    %80 = vector.broadcast %79 : vector<1x32xf32> to vector<16x32xf32>
    %81 = arith.addf %78, %80 : vector<16x32xf32>
    %82 = arith.addf %81, %0 : vector<16x32xf32>
    %c0_30 = arith.constant 0 : index
    %c0_31 = arith.constant 0 : index
    %83 = vector.load %arg5[%c0_30, %c0_31] : memref<1x32xf32, #tpu.memory_space<vmem>>, vector<1x32xf32>
    %c0_32 = arith.constant 0 : index
    %c0_33 = arith.constant 0 : index
    %84 = vector.load %arg6[%c0_32, %c0_33] : memref<1x32xf32, #tpu.memory_space<vmem>>, vector<1x32xf32>
    %cst_34 = arith.constant dense<0.000000e+00> : vector<16xf32>
    %85 = vector.multi_reduction <add>, %82, %cst_34 [1] : vector<16x32xf32> to vector<16xf32>
    %86 = vector.shape_cast %85 : vector<16xf32> to vector<16x1xf32>
    %cst_35 = arith.constant 3.200000e+01 : f32
    %87 = vector.broadcast %cst_35 : f32 to vector<16x1xf32>
    %88 = arith.divf %86, %87 : vector<16x1xf32>
    %89 = vector.broadcast %88 : vector<16x1xf32> to vector<16x32xf32>
    %90 = arith.subf %82, %89 : vector<16x32xf32>
    %91 = arith.mulf %90, %90 : vector<16x32xf32>
    %cst_36 = arith.constant dense<0.000000e+00> : vector<16xf32>
    %92 = vector.multi_reduction <add>, %91, %cst_36 [1] : vector<16x32xf32> to vector<16xf32>
    %93 = vector.shape_cast %92 : vector<16xf32> to vector<16x1xf32>
    %cst_37 = arith.constant 3.200000e+01 : f32
    %94 = vector.broadcast %cst_37 : f32 to vector<16x1xf32>
    %95 = arith.divf %93, %94 : vector<16x1xf32>
    %96 = vector.broadcast %88 : vector<16x1xf32> to vector<16x32xf32>
    %97 = arith.subf %82, %96 : vector<16x32xf32>
    %cst_38 = arith.constant 9.99999974E-6 : f32
    %98 = vector.broadcast %cst_38 : f32 to vector<16x1xf32>
    %99 = arith.addf %95, %98 : vector<16x1xf32>
    %100 = math.rsqrt %99 : vector<16x1xf32>
    %101 = vector.broadcast %100 : vector<16x1xf32> to vector<16x32xf32>
    %102 = arith.mulf %97, %101 : vector<16x32xf32>
    %103 = vector.broadcast %83 : vector<1x32xf32> to vector<16x32xf32>
    %104 = arith.mulf %102, %103 : vector<16x32xf32>
    %105 = vector.broadcast %84 : vector<1x32xf32> to vector<16x32xf32>
    %106 = arith.addf %104, %105 : vector<16x32xf32>
    %c0_39 = arith.constant 0 : index
    %c0_40 = arith.constant 0 : index
    %107 = vector.load %arg7[%c0_39, %c0_40] : memref<32x128xf32, #tpu.memory_space<vmem>>, vector<32x128xf32>
    %cst_41 = arith.constant dense<0.000000e+00> : vector<16x128xf32>
    %108 = tpu.matmul %106, %107, %cst_41 {dimension_numbers = #tpu.dot_dimension_numbers<[1], [0], [0], [1], [0, 0, 1, 1], [], []>} : vector<16x32xf32>, vector<32x128xf32>, vector<16x128xf32> -> vector<16x128xf32>
    %c0_42 = arith.constant 0 : index
    %c0_43 = arith.constant 0 : index
    %109 = vector.load %arg8[%c0_42, %c0_43] : memref<1x128xf32, #tpu.memory_space<vmem>>, vector<1x128xf32>
    %110 = vector.broadcast %109 : vector<1x128xf32> to vector<16x128xf32>
    %111 = arith.addf %108, %110 : vector<16x128xf32>
    %cst_44 = arith.constant 0.000000e+00 : f32
    %112 = vector.broadcast %cst_44 : f32 to vector<16x128xf32>
    %113 = arith.maximumf %111, %112 : vector<16x128xf32>
    %c0_45 = arith.constant 0 : index
    %c0_46 = arith.constant 0 : index
    %114 = vector.load %arg9[%c0_45, %c0_46] : memref<128x32xf32, #tpu.memory_space<vmem>>, vector<128x32xf32>
    %cst_47 = arith.constant dense<0.000000e+00> : vector<16x32xf32>
    %115 = tpu.matmul %113, %114, %cst_47 {dimension_numbers = #tpu.dot_dimension_numbers<[1], [0], [0], [1], [0, 0, 1, 1], [], []>} : vector<16x128xf32>, vector<128x32xf32>, vector<16x32xf32> -> vector<16x32xf32>
    %c0_48 = arith.constant 0 : index
    %c0_49 = arith.constant 0 : index
    %116 = vector.load %arg10[%c0_48, %c0_49] : memref<1x32xf32, #tpu.memory_space<vmem>>, vector<1x32xf32>
    %117 = vector.broadcast %116 : vector<1x32xf32> to vector<16x32xf32>
    %118 = arith.addf %115, %117 : vector<16x32xf32>
    %119 = arith.addf %118, %106 : vector<16x32xf32>
    %c0_50 = arith.constant 0 : index
    %c0_51 = arith.constant 0 : index
    %120 = vector.load %arg11[%c0_50, %c0_51] : memref<1x32xf32, #tpu.memory_space<vmem>>, vector<1x32xf32>
    %c0_52 = arith.constant 0 : index
    %c0_53 = arith.constant 0 : index
    %121 = vector.load %arg12[%c0_52, %c0_53] : memref<1x32xf32, #tpu.memory_space<vmem>>, vector<1x32xf32>
    %cst_54 = arith.constant dense<0.000000e+00> : vector<16xf32>
    %122 = vector.multi_reduction <add>, %119, %cst_54 [1] : vector<16x32xf32> to vector<16xf32>
    %123 = vector.shape_cast %122 : vector<16xf32> to vector<16x1xf32>
    %cst_55 = arith.constant 3.200000e+01 : f32
    %124 = vector.broadcast %cst_55 : f32 to vector<16x1xf32>
    %125 = arith.divf %123, %124 : vector<16x1xf32>
    %126 = vector.broadcast %125 : vector<16x1xf32> to vector<16x32xf32>
    %127 = arith.subf %119, %126 : vector<16x32xf32>
    %128 = arith.mulf %127, %127 : vector<16x32xf32>
    %cst_56 = arith.constant dense<0.000000e+00> : vector<16xf32>
    %129 = vector.multi_reduction <add>, %128, %cst_56 [1] : vector<16x32xf32> to vector<16xf32>
    %130 = vector.shape_cast %129 : vector<16xf32> to vector<16x1xf32>
    %cst_57 = arith.constant 3.200000e+01 : f32
    %131 = vector.broadcast %cst_57 : f32 to vector<16x1xf32>
    %132 = arith.divf %130, %131 : vector<16x1xf32>
    %133 = vector.broadcast %125 : vector<16x1xf32> to vector<16x32xf32>
    %134 = arith.subf %119, %133 : vector<16x32xf32>
    %cst_58 = arith.constant 9.99999974E-6 : f32
    %135 = vector.broadcast %cst_58 : f32 to vector<16x1xf32>
    %136 = arith.addf %132, %135 : vector<16x1xf32>
    %137 = math.rsqrt %136 : vector<16x1xf32>
    %138 = vector.broadcast %137 : vector<16x1xf32> to vector<16x32xf32>
    %139 = arith.mulf %134, %138 : vector<16x32xf32>
    %140 = vector.broadcast %120 : vector<1x32xf32> to vector<16x32xf32>
    %141 = arith.mulf %139, %140 : vector<16x32xf32>
    %142 = vector.broadcast %121 : vector<1x32xf32> to vector<16x32xf32>
    %143 = arith.addf %141, %142 : vector<16x32xf32>
    %c0_59 = arith.constant 0 : index
    %c0_60 = arith.constant 0 : index
    %144 = vector.load %arg13[%c0_59, %c0_60] : memref<16x32xf32, #tpu.memory_space<vmem>>, vector<16x32xf32>
    tpu.vector_store %arg13[%c0_59, %c0_60], %143 {strides = array<i32>} : memref<16x32xf32, #tpu.memory_space<vmem>>, vector<16x32xf32>,
    return
  }
  func.func @transform_0(%arg0: i32) -> (i32, i32) {
    %c0_i32 = arith.constant 0 : i32
    %c0_i32_0 = arith.constant 0 : i32
    return %arg0, %c0_i32 : i32, i32
  }
  func.func @transform_1(%arg0: i32) -> (i32, i32) {
    %c0_i32 = arith.constant 0 : i32
    %c0_i32_0 = arith.constant 0 : i32
    %c0_i32_1 = arith.constant 0 : i32
    return %c0_i32, %c0_i32_0 : i32, i32
  }
  func.func @transform_2(%arg0: i32) -> (i32, i32) {
    %c0_i32 = arith.constant 0 : i32
    %c0_i32_0 = arith.constant 0 : i32
    %c0_i32_1 = arith.constant 0 : i32
    return %c0_i32, %c0_i32_0 : i32, i32
  }
  func.func @transform_3(%arg0: i32) -> (i32, i32) {
    %c0_i32 = arith.constant 0 : i32
    %c0_i32_0 = arith.constant 0 : i32
    %c0_i32_1 = arith.constant 0 : i32
    return %c0_i32, %c0_i32_0 : i32, i32
  }
  func.func @transform_4(%arg0: i32) -> (i32, i32) {
    %c0_i32 = arith.constant 0 : i32
    %c0_i32_0 = arith.constant 0 : i32
    %c0_i32_1 = arith.constant 0 : i32
    return %c0_i32, %c0_i32_0 : i32, i32
  }
  func.func @transform_5(%arg0: i32) -> (i32, i32) {
    %c0_i32 = arith.constant 0 : i32
    %c0_i32_0 = arith.constant 0 : i32
    %c0_i32_1 = arith.constant 0 : i32
    return %c0_i32, %c0_i32_0 : i32, i32
  }
  func.func @transform_6(%arg0: i32) -> (i32, i32) {
    %c0_i32 = arith.constant 0 : i32
    %c0_i32_0 = arith.constant 0 : i32
    %c0_i32_1 = arith.constant 0 : i32
    return %c0_i32, %c0_i32_0 : i32, i32
  }
  func.func @transform_7(%arg0: i32) -> (i32, i32) {
    %c0_i32 = arith.constant 0 : i32
    %c0_i32_0 = arith.constant 0 : i32
    %c0_i32_1 = arith.constant 0 : i32
    return %c0_i32, %c0_i32_0 : i32, i32
  }
  func.func @transform_8(%arg0: i32) -> (i32, i32) {
    %c0_i32 = arith.constant 0 : i32
    %c0_i32_0 = arith.constant 0 : i32
    %c0_i32_1 = arith.constant 0 : i32
    return %c0_i32, %c0_i32_0 : i32, i32
  }
  func.func @transform_9(%arg0: i32) -> (i32, i32) {
    %c0_i32 = arith.constant 0 : i32
    %c0_i32_0 = arith.constant 0 : i32
    %c0_i32_1 = arith.constant 0 : i32
    return %c0_i32, %c0_i32_0 : i32, i32
  }
  func.func @transform_10(%arg0: i32) -> (i32, i32) {
    %c0_i32 = arith.constant 0 : i32
    %c0_i32_0 = arith.constant 0 : i32
    %c0_i32_1 = arith.constant 0 : i32
    return %c0_i32, %c0_i32_0 : i32, i32
  }
  func.func @transform_11(%arg0: i32) -> (i32, i32) {
    %c0_i32 = arith.constant 0 : i32
    %c0_i32_0 = arith.constant 0 : i32
    %c0_i32_1 = arith.constant 0 : i32
    return %c0_i32, %c0_i32_0 : i32, i32
  }
  func.func @transform_12(%arg0: i32) -> (i32, i32) {
    %c0_i32 = arith.constant 0 : i32
    %c0_i32_0 = arith.constant 0 : i32
    return %arg0, %c0_i32 : i32, i32
  }
}

</mosaic_0001>

<llo_original>
// kernel: tpu_custom_call.1
$region0: #{tpu_custom_call.1}
  #allocation0 [shape = 'u32[]', space=smem, size = 0x4, offset = 0x4, fixed_abs, tag = 'smem constant byte address 0x4 - core index']
  #allocation1 [shape = 'u32[144,128]{1,0:T(1,128)}', space=vmem, size = 0x12000, scoped, tag = 'internal scratch']
  %s0 = inlined_call_operand.vmem [shape: f32[16,32], index: 0, kind: input, shape index: {}]
  %s1 = inlined_call_operand.vmem [shape: f32[32,96], index: 1, kind: input, shape index: {}]
  %s2 = inlined_call_operand.vmem [shape: f32[32,32], index: 2, kind: input, shape index: {}]
  %s3 = inlined_call_operand.vmem [shape: f32[1,32], index: 3, kind: input, shape index: {}]
  %s4 = inlined_call_operand.vmem [shape: f32[1,32], index: 4, kind: input, shape index: {}]
  %s5 = inlined_call_operand.vmem [shape: f32[1,32], index: 5, kind: input, shape index: {}]
  %s6 = inlined_call_operand.vmem [shape: f32[32,128], index: 6, kind: input, shape index: {}]
  %s7 = inlined_call_operand.vmem [shape: f32[1,128], index: 7, kind: input, shape index: {}]
  %s8 = inlined_call_operand.vmem [shape: f32[128,32], index: 8, kind: input, shape index: {}]
  %s9 = inlined_call_operand.vmem [shape: f32[1,32], index: 9, kind: input, shape index: {}]
  %s10 = inlined_call_operand.vmem [shape: f32[1,32], index: 10, kind: input, shape index: {}]
  %s11 = inlined_call_operand.vmem [shape: f32[1,32], index: 11, kind: input, shape index: {}]
  %s12 = inlined_call_operand.hbm [shape: f32[16,32], index: 12, kind: output, shape index: {}]
  %s13 = sld [smem:[#allocation0]]
  $region58: #{tpu_custom_call.1} parent=0
    _
  %s15 = ssub.s32 1, %s13
  %s16 = scalar_select 0, %s15, %s13
  $region1: #{tpu_custom_call.1} parent=0
    #allocation2 [shape = 'u8[8192]{0}', space=vmem, size = 0x2000, scoped, tag = 'output window, operand 0, single buffered']
    #allocation3 [shape = 's32[1]{0}', space=sflag, size = 0x4, scoped, tag = 'scoped memory for tpu_custom_call.1']
    %17 = vsyncpa [#allocation3], 0
    // Predicated region
    $region2: #{tpu_custom_call.1} parent=1 // pred_check
      _
    $region3: #{tpu_custom_call.1} parent=1 // pred_check_branch
      %19 = sbr.rel (0) target = $region5
    $region4: #{tpu_custom_call.1} parent=1 // pred_region
      _
    $region5: #{tpu_custom_call.1} parent=1 // pred_fallthru
      _
    // Predicated region
    $region6: #{tpu_custom_call.1} parent=1 // pred_check
      _
    $region7: #{tpu_custom_call.1} parent=1 // pred_check_branch
      %21 = sbr.rel (0) target = $region9
    $region8: #{tpu_custom_call.1} parent=1 // pred_region
      _
    $region9: #{tpu_custom_call.1} parent=1 // pred_fallthru
      _
    // Predicated region
    $region10: #{tpu_custom_call.1} parent=1 // pred_check
      _
    $region11: #{tpu_custom_call.1} parent=1 // pred_check_branch
      %23 = sbr.rel (0) target = $region13
    $region12: #{tpu_custom_call.1} parent=1 // pred_region
      _
    $region13: #{tpu_custom_call.1} parent=1 // pred_fallthru
      _
    // Predicated region
    $region14: #{tpu_custom_call.1} parent=1 // pred_check
      _
    $region15: #{tpu_custom_call.1} parent=1 // pred_check_branch
      %25 = sbr.rel (0) target = $region17
    $region16: #{tpu_custom_call.1} parent=1 // pred_region
      _
    $region17: #{tpu_custom_call.1} parent=1 // pred_fallthru
      _
    // Predicated region
    $region18: #{tpu_custom_call.1} parent=1 // pred_check
      _
    $region19: #{tpu_custom_call.1} parent=1 // pred_check_branch
      %27 = sbr.rel (0) target = $region21
    $region20: #{tpu_custom_call.1} parent=1 // pred_region
      _
    $region21: #{tpu_custom_call.1} parent=1 // pred_fallthru
      _
    // Predicated region
    $region22: #{tpu_custom_call.1} parent=1 // pred_check
      _
    $region23: #{tpu_custom_call.1} parent=1 // pred_check_branch
      %29 = sbr.rel (0) target = $region25
    $region24: #{tpu_custom_call.1} parent=1 // pred_region
      _
    $region25: #{tpu_custom_call.1} parent=1 // pred_fallthru
      _
    // Predicated region
    $region26: #{tpu_custom_call.1} parent=1 // pred_check
      _
    $region27: #{tpu_custom_call.1} parent=1 // pred_check_branch
      %31 = sbr.rel (0) target = $region29
    $region28: #{tpu_custom_call.1} parent=1 // pred_region
      _
    $region29: #{tpu_custom_call.1} parent=1 // pred_fallthru
      _
    // Predicated region
    $region30: #{tpu_custom_call.1} parent=1 // pred_check
      _
    $region31: #{tpu_custom_call.1} parent=1 // pred_check_branch
      %33 = sbr.rel (0) target = $region33
    $region32: #{tpu_custom_call.1} parent=1 // pred_region
      _
    $region33: #{tpu_custom_call.1} parent=1 // pred_fallthru
      _
    // Predicated region
    $region34: #{tpu_custom_call.1} parent=1 // pred_check
      _
    $region35: #{tpu_custom_call.1} parent=1 // pred_check_branch
      %35 = sbr.rel (0) target = $region37
    $region36: #{tpu_custom_call.1} parent=1 // pred_region
      _
    $region37: #{tpu_custom_call.1} parent=1 // pred_fallthru
      _
    // Predicated region
    $region38: #{tpu_custom_call.1} parent=1 // pred_check
      _
    $region39: #{tpu_custom_call.1} parent=1 // pred_check_branch
      %37 = sbr.rel (0) target = $region41
    $region40: #{tpu_custom_call.1} parent=1 // pred_region
      _
    $region41: #{tpu_custom_call.1} parent=1 // pred_fallthru
      _
    // Predicated region
    $region42: #{tpu_custom_call.1} parent=1 // pred_check
      _
    $region43: #{tpu_custom_call.1} parent=1 // pred_check_branch
      %39 = sbr.rel (0) target = $region45
    $region44: #{tpu_custom_call.1} parent=1 // pred_region
      _
    $region45: #{tpu_custom_call.1} parent=1 // pred_fallthru
      _
    // Predicated region
    $region46: #{tpu_custom_call.1} parent=1 // pred_check
      _
    $region47: #{tpu_custom_call.1} parent=1 // pred_check_branch
      %41 = sbr.rel (0) target = $region49
    $region48: #{tpu_custom_call.1} parent=1 // pred_region
      _
    $region49: #{tpu_custom_call.1} parent=1 // pred_fallthru
      _
    %v42 = vld [vmem:[%s0] sm:$0xff]
    %v43 = vld [vmem:[%s0 + $0x8] sm:$0xff]
    %v44 = vld [vmem:[%s1] sm:$0xff]
    %v45 = vld [vmem:[%s1 + $0x8] sm:$0xff]
    %v46 = vld [vmem:[%s1 + $0x10] sm:$0xff]
    %v47 = vld [vmem:[%s1 + $0x18] sm:$0xff]
    %vm48 = vcmask 261120
    %v50 = vsel %vm48, %v42, 0
    %v53 = vsel %vm48, %v43, 0
    %55 = vmatprep.subr.mxu0 0.0
    %56 = vmatpush1.msra.mxu0 0.0
    %57 = vmatprep.subr.mxu0 0.0
    %58 = vmatpush1.msra.mxu0 0.0
    %59 = vmatprep.subr.mxu0 0.0
    %60 = vmatpush1.msra.mxu0 0.0
    %61 = vmatprep.subr.mxu0 0.0
    %62 = vmatpush1.msra.mxu0 0.0
    %63 = vmatprep.subr.mxu0 0.0
    %64 = vmatpush1.msra.mxu0 0.0
    %65 = vmatprep.subr.mxu0 0.0
    %66 = vmatpush1.msra.mxu0 0.0
    %67 = vmatprep.subr.mxu0 0.0
    %68 = vmatpush1.msra.mxu0 0.0
    %69 = vmatprep.subr.mxu0 0.0
    %70 = vmatpush1.msra.mxu0 0.0
    %71 = vmatprep.subr.mxu0 0.0
    %72 = vmatpush1.msra.mxu0 0.0
    %73 = vmatprep.subr.mxu0 0.0
    %74 = vmatpush1.msra.mxu0 0.0
    %75 = vmatprep.subr.mxu0 0.0
    %76 = vmatpush1.msra.mxu0 0.0
    %77 = vmatprep.subr.mxu0 0.0
    %78 = vmatpush1.msra.mxu0 0.0
    %79 = vmatprep.subr.mxu0 0.0
    %80 = vmatpush1.msra.mxu0 %v47
    %81 = vmatprep.subr.mxu0 0.0
    %82 = vmatpush1.msra.mxu0 %v46
    %83 = vmatprep.subr.mxu0 0.0
    %84 = vmatpush1.msra.mxu0 %v45
    %85 = vmatprep.subr.mxu0 0.0
    %86 = vmatpush1.msra.mxu0 %v44
    %87 = vmatprep.subr.mxu0 0.0
    %88 = vmatpush2.msra.mxu0 0.0
    %89 = vmatprep.subr.mxu0 0.0
    %90 = vmatpush2.msra.mxu0 0.0
    %91 = vmatprep.subr.mxu0 0.0
    %92 = vmatpush2.msra.mxu0 0.0
    %93 = vmatprep.subr.mxu0 0.0
    %94 = vmatpush2.msra.mxu0 0.0
    %95 = vmatprep.subr.mxu0 0.0
    %96 = vmatpush2.msra.mxu0 0.0
    %97 = vmatprep.subr.mxu0 0.0
    %98 = vmatpush2.msra.mxu0 0.0
    %99 = vmatprep.subr.mxu0 0.0
    %100 = vmatpush2.msra.mxu0 0.0
    %101 = vmatprep.subr.mxu0 0.0
    %102 = vmatpush2.msra.mxu0 0.0
    %103 = vmatprep.subr.mxu0 0.0
    %104 = vmatpush2.msra.mxu0 0.0
    %105 = vmatprep.subr.mxu0 0.0
    %106 = vmatpush2.msra.mxu0 0.0
    %107 = vmatprep.subr.mxu0 0.0
    %108 = vmatpush2.msra.mxu0 0.0
    %109 = vmatprep.subr.mxu0 0.0
    %110 = vmatpush2.msra.mxu0 0.0
    %111 = vmatprep.subr.mxu0 0.0
    %112 = vmatpush2.msra.mxu0 0.0
    %113 = vmatprep.subr.mxu0 0.0
    %114 = vmatpush2.msra.mxu0 0.0
    %115 = vmatprep.subr.mxu0 0.0
    %116 = vmatpush2.msra.mxu0 0.0
    %117 = vmatprep.subr.mxu0 0.0
    %118 = vmatpush2.msra.mxu0 0.0
    %119 = vmatprep.mubr.f32.mxu0 0.0
    %120 = vmatmul.mubr.f32.gmra.mxu0 %v50
    %v121 = vpop.f32.mrf.mxu0
    %v122 = vadd.f32 0.0, %v121
    %v123 = vpop.f32.mrf.mxu0
    %124 = vmatprep.mubr.f32.mxu0 0.0
    %125 = vmatmul.mubr.f32.gmra.mxu0 %v53
    %v126 = vpop.f32.mrf.mxu0
    %v127 = vadd.f32 0.0, %v126
    %v128 = vpop.f32.mrf.mxu0
    %129 = vdwg.mxu0
    %131 = vrot.lane.b32.xlu0 %v122, 96
    %v132 = vpop.permute.xlu0 %131
    %vm133 = vcmask 64512
    %v134 = vsel %vm133, %v122, 0
    %v136 = vsel %vm133, %v132, 0
    %138 = vmatprep.subr.mxu0 0.0
    %139 = vmatpush1.xpose.msra.mxu0 0.0
    %140 = vmatprep.subr.mxu0 0.0
    %141 = vmatpush1.xpose.msra.mxu0 0.0
    %142 = vmatprep.subr.mxu0 0.0
    %143 = vmatpush1.xpose.msra.mxu0 0.0
    %144 = vmatprep.subr.mxu0 0.0
    %145 = vmatpush1.xpose.msra.mxu0 0.0
    %146 = vmatprep.subr.mxu0 0.0
    %147 = vmatpush1.xpose.msra.mxu0 0.0
    %148 = vmatprep.subr.mxu0 0.0
    %149 = vmatpush1.xpose.msra.mxu0 0.0
    %150 = vmatprep.subr.mxu0 0.0
    %151 = vmatpush1.xpose.msra.mxu0 0.0
    %152 = vmatprep.subr.mxu0 0.0
    %153 = vmatpush1.xpose.msra.mxu0 0.0
    %154 = vmatprep.subr.mxu0 0.0
    %155 = vmatpush1.xpose.msra.mxu0 0.0
    %156 = vmatprep.subr.mxu0 0.0
    %157 = vmatpush1.xpose.msra.mxu0 0.0
    %158 = vmatprep.subr.mxu0 0.0
    %159 = vmatpush1.xpose.msra.mxu0 0.0
    %160 = vmatprep.subr.mxu0 0.0
    %161 = vmatpush1.xpose.msra.mxu0 0.0
    %162 = vmatprep.subr.mxu0 0.0
    %163 = vmatpush1.xpose.msra.mxu0 0.0
    %164 = vmatprep.subr.mxu0 0.0
    %165 = vmatpush1.xpose.msra.mxu0 0.0
    %166 = vmatprep.subr.mxu0 0.0
    %167 = vmatpush1.xpose.msra.mxu0 0.0
    %168 = vmatprep.subr.mxu0 0.0
    %169 = vmatpush1.xpose.msra.mxu0 %v136
    %170 = vmatprep.subr.mxu0 0.0
    %171 = vmatpush2.xpose.msra.mxu0 0.0
    %172 = vmatprep.subr.mxu0 0.0
    %173 = vmatpush2.xpose.msra.mxu0 0.0
    %174 = vmatprep.subr.mxu0 0.0
    %175 = vmatpush2.xpose.msra.mxu0 0.0
    %176 = vmatprep.subr.mxu0 0.0
    %177 = vmatpush2.xpose.msra.mxu0 0.0
    %178 = vmatprep.subr.mxu0 0.0
    %179 = vmatpush2.xpose.msra.mxu0 0.0
    %180 = vmatprep.subr.mxu0 0.0
    %181 = vmatpush2.xpose.msra.mxu0 0.0
    %182 = vmatprep.subr.mxu0 0.0
    %183 = vmatpush2.xpose.msra.mxu0 0.0
    %184 = vmatprep.subr.mxu0 0.0
    %185 = vmatpush2.xpose.msra.mxu0 0.0
    %186 = vmatprep.subr.mxu0 0.0
    %187 = vmatpush2.xpose.msra.mxu0 0.0
    %188 = vmatprep.subr.mxu0 0.0
    %189 = vmatpush2.xpose.msra.mxu0 0.0
    %190 = vmatprep.subr.mxu0 0.0
    %191 = vmatpush2.xpose.msra.mxu0 0.0
    %192 = vmatprep.subr.mxu0 0.0
    %193 = vmatpush2.xpose.msra.mxu0 0.0
    %194 = vmatprep.subr.mxu0 0.0
    %195 = vmatpush2.xpose.msra.mxu0 0.0
    %196 = vmatprep.subr.mxu0 0.0
    %197 = vmatpush2.xpose.msra.mxu0 0.0
    %198 = vmatprep.subr.mxu0 0.0
    %199 = vmatpush2.xpose.msra.mxu0 0.0
    %200 = vmatprep.subr.mxu0 0.0
    %201 = vmatpush2.xpose.msra.mxu0 0.0
    %202 = vmatprep.mubr.f32.mxu0 0.0
    %203 = vmatmul.mubr.f32.gmra.mxu0 %v134
    %v204 = vpop.f32.mrf.mxu0
    %v205 = vadd.f32 0.0, %v204
    %v206 = vpop.f32.mrf.mxu0
    %207 = vdwg.mxu0
    %209 = vrot.lane.b32.xlu0 %v127, 96
    %v210 = vpop.permute.xlu0 %209
    %v211 = vsel %vm133, %v127, 0
    %v213 = vsel %vm133, %v210, 0
    %215 = vmatprep.subr.mxu0 0.0
    %216 = vmatpush1.xpose.msra.mxu0 0.0
    %217 = vmatprep.subr.mxu0 0.0
    %218 = vmatpush1.xpose.msra.mxu0 0.0
    %219 = vmatprep.subr.mxu0 0.0
    %220 = vmatpush1.xpose.msra.mxu0 0.0
    %221 = vmatprep.subr.mxu0 0.0
    %222 = vmatpush1.xpose.msra.mxu0 0.0
    %223 = vmatprep.subr.mxu0 0.0
    %224 = vmatpush1.xpose.msra.mxu0 0.0
    %225 = vmatprep.subr.mxu0 0.0
    %226 = vmatpush1.xpose.msra.mxu0 0.0
    %227 = vmatprep.subr.mxu0 0.0
    %228 = vmatpush1.xpose.msra.mxu0 0.0
    %229 = vmatprep.subr.mxu0 0.0
    %230 = vmatpush1.xpose.msra.mxu0 0.0
    %231 = vmatprep.subr.mxu0 0.0
    %232 = vmatpush1.xpose.msra.mxu0 0.0
    %233 = vmatprep.subr.mxu0 0.0
    %234 = vmatpush1.xpose.msra.mxu0 0.0
    %235 = vmatprep.subr.mxu0 0.0
    %236 = vmatpush1.xpose.msra.mxu0 0.0
    %237 = vmatprep.subr.mxu0 0.0
    %238 = vmatpush1.xpose.msra.mxu0 0.0
    %239 = vmatprep.subr.mxu0 0.0
    %240 = vmatpush1.xpose.msra.mxu0 0.0
    %241 = vmatprep.subr.mxu0 0.0
    %242 = vmatpush1.xpose.msra.mxu0 0.0
    %243 = vmatprep.subr.mxu0 0.0
    %244 = vmatpush1.xpose.msra.mxu0 0.0
    %245 = vmatprep.subr.mxu0 0.0
    %246 = vmatpush1.xpose.msra.mxu0 %v213
    %247 = vmatprep.subr.mxu0 0.0
    %248 = vmatpush2.xpose.msra.mxu0 0.0
    %249 = vmatprep.subr.mxu0 0.0
    %250 = vmatpush2.xpose.msra.mxu0 0.0
    %251 = vmatprep.subr.mxu0 0.0
    %252 = vmatpush2.xpose.msra.mxu0 0.0
    %253 = vmatprep.subr.mxu0 0.0
    %254 = vmatpush2.xpose.msra.mxu0 0.0
    %255 = vmatprep.subr.mxu0 0.0
    %256 = vmatpush2.xpose.msra.mxu0 0.0
    %257 = vmatprep.subr.mxu0 0.0
    %258 = vmatpush2.xpose.msra.mxu0 0.0
    %259 = vmatprep.subr.mxu0 0.0
    %260 = vmatpush2.xpose.msra.mxu0 0.0
    %261 = vmatprep.subr.mxu0 0.0
    %262 = vmatpush2.xpose.msra.mxu0 0.0
    %263 = vmatprep.subr.mxu0 0.0
    %264 = vmatpush2.xpose.msra.mxu0 0.0
    %265 = vmatprep.subr.mxu0 0.0
    %266 = vmatpush2.xpose.msra.mxu0 0.0
    %267 = vmatprep.subr.mxu0 0.0
    %268 = vmatpush2.xpose.msra.mxu0 0.0
    %269 = vmatprep.subr.mxu0 0.0
    %270 = vmatpush2.xpose.msra.mxu0 0.0
    %271 = vmatprep.subr.mxu0 0.0
    %272 = vmatpush2.xpose.msra.mxu0 0.0
    %273 = vmatprep.subr.mxu0 0.0
    %274 = vmatpush2.xpose.msra.mxu0 0.0
    %275 = vmatprep.subr.mxu0 0.0
    %276 = vmatpush2.xpose.msra.mxu0 0.0
    %277 = vmatprep.subr.mxu0 0.0
    %278 = vmatpush2.xpose.msra.mxu0 0.0
    %279 = vmatprep.mubr.f32.mxu0 0.0
    %280 = vmatmul.mubr.f32.gmra.mxu0 %v211
    %v281 = vpop.f32.mrf.mxu0
    %v282 = vadd.f32 0.0, %v281
    %v283 = vpop.f32.mrf.mxu0
    %284 = vdwg.mxu0
    %v285 = vsel %vm133, %v205, -inf
    %286 = vmax.xlane.f32.xlu0 %v285
    %v287 = vpop.xlane.xlu0 %286
    %v288 = vsel %vm133, %v282, -inf
    %289 = vmax.xlane.f32.xlu0 %v288
    %v290 = vpop.xlane.xlu0 %289
    %v291 = vsub.f32 %v205, %v287
    %v292 = vsub.f32 %v282, %v290
    %v293 = vmul.f32 %v291, 1.442695
    %v294 = vpow.pop %v293
    %v295 = vmul.f32 %v292, 1.442695
    %v296 = vpow.pop %v295
    %v297 = vsel %vm133, %v294, 0.0
    %298 = vadd.xlane.f32.xlu0 %v297
    %v299 = vpop.xlane.xlu0 %298
    %v300 = vsel %vm133, %v296, 0.0
    %301 = vadd.xlane.f32.xlu0 %v300
    %v302 = vpop.xlane.xlu0 %301
    %v303 = vrcp.pop %v299
    %v304 = vrcp.pop %v302
    %v305 = vmul.f32 %v294, %v303
    %v306 = vmul.f32 %v296, %v304
    %307 = vrot.lane.b32.xlu0 %v122, 64
    %v308 = vpop.permute.xlu0 %307
    %v311 = vsel %vm133, %v305, 0
    %313 = vmatprep.subr.mxu0 0.0
    %314 = vmatpush1.msra.mxu0 0.0
    %315 = vmatprep.subr.mxu0 0.0
    %316 = vmatpush1.msra.mxu0 0.0
    %317 = vmatprep.subr.mxu0 0.0
    %318 = vmatpush1.msra.mxu0 0.0
    %319 = vmatprep.subr.mxu0 0.0
    %320 = vmatpush1.msra.mxu0 0.0
    %321 = vmatprep.subr.mxu0 0.0
    %322 = vmatpush1.msra.mxu0 0.0
    %323 = vmatprep.subr.mxu0 0.0
    %324 = vmatpush1.msra.mxu0 0.0
    %325 = vmatprep.subr.mxu0 0.0
    %326 = vmatpush1.msra.mxu0 0.0
    %327 = vmatprep.subr.mxu0 0.0
    %328 = vmatpush1.msra.mxu0 0.0
    %329 = vmatprep.subr.mxu0 0.0
    %330 = vmatpush1.msra.mxu0 0.0
    %331 = vmatprep.subr.mxu0 0.0
    %332 = vmatpush1.msra.mxu0 0.0
    %333 = vmatprep.subr.mxu0 0.0
    %334 = vmatpush1.msra.mxu0 0.0
    %335 = vmatprep.subr.mxu0 0.0
    %336 = vmatpush1.msra.mxu0 0.0
    %337 = vmatprep.subr.mxu0 0.0
    %338 = vmatpush1.msra.mxu0 0.0
    %339 = vmatprep.subr.mxu0 0.0
    %340 = vmatpush1.msra.mxu0 0.0
    %341 = vmatprep.subr.mxu0 0.0
    %342 = vmatpush1.msra.mxu0 0.0
    %343 = vmatprep.subr.mxu0 0.0
    %344 = vmatpush1.msra.mxu0 %v308
    %345 = vmatprep.subr.mxu0 0.0
    %346 = vmatpush2.msra.mxu0 0.0
    %347 = vmatprep.subr.mxu0 0.0
    %348 = vmatpush2.msra.mxu0 0.0
    %349 = vmatprep.subr.mxu0 0.0
    %350 = vmatpush2.msra.mxu0 0.0
    %351 = vmatprep.subr.mxu0 0.0
    %352 = vmatpush2.msra.mxu0 0.0
    %353 = vmatprep.subr.mxu0 0.0
    %354 = vmatpush2.msra.mxu0 0.0
    %355 = vmatprep.subr.mxu0 0.0
    %356 = vmatpush2.msra.mxu0 0.0
    %357 = vmatprep.subr.mxu0 0.0
    %358 = vmatpush2.msra.mxu0 0.0
    %359 = vmatprep.subr.mxu0 0.0
    %360 = vmatpush2.msra.mxu0 0.0
    %361 = vmatprep.subr.mxu0 0.0
    %362 = vmatpush2.msra.mxu0 0.0
    %363 = vmatprep.subr.mxu0 0.0
    %364 = vmatpush2.msra.mxu0 0.0
    %365 = vmatprep.subr.mxu0 0.0
    %366 = vmatpush2.msra.mxu0 0.0
    %367 = vmatprep.subr.mxu0 0.0
    %368 = vmatpush2.msra.mxu0 0.0
    %369 = vmatprep.subr.mxu0 0.0
    %370 = vmatpush2.msra.mxu0 0.0
    %371 = vmatprep.subr.mxu0 0.0
    %372 = vmatpush2.msra.mxu0 0.0
    %373 = vmatprep.subr.mxu0 0.0
    %374 = vmatpush2.msra.mxu0 0.0
    %375 = vmatprep.subr.mxu0 0.0
    %376 = vmatpush2.msra.mxu0 0.0
    %377 = vmatprep.mubr.f32.mxu0 0.0
    %378 = vmatmul.mubr.f32.gmra.mxu0 %v311
    %v379 = vpop.f32.mrf.mxu0
    %v380 = vadd.f32 0.0, %v379
    %v381 = vpop.f32.mrf.mxu0
    %382 = vdwg.mxu0
    %383 = vrot.lane.b32.xlu0 %v127, 64
    %v384 = vpop.permute.xlu0 %383
    %v387 = vsel %vm133, %v306, 0
    %389 = vmatprep.subr.mxu0 0.0
    %390 = vmatpush1.msra.mxu0 0.0
    %391 = vmatprep.subr.mxu0 0.0
    %392 = vmatpush1.msra.mxu0 0.0
    %393 = vmatprep.subr.mxu0 0.0
    %394 = vmatpush1.msra.mxu0 0.0
    %395 = vmatprep.subr.mxu0 0.0
    %396 = vmatpush1.msra.mxu0 0.0
    %397 = vmatprep.subr.mxu0 0.0
    %398 = vmatpush1.msra.mxu0 0.0
    %399 = vmatprep.subr.mxu0 0.0
    %400 = vmatpush1.msra.mxu0 0.0
    %401 = vmatprep.subr.mxu0 0.0
    %402 = vmatpush1.msra.mxu0 0.0
    %403 = vmatprep.subr.mxu0 0.0
    %404 = vmatpush1.msra.mxu0 0.0
    %405 = vmatprep.subr.mxu0 0.0
    %406 = vmatpush1.msra.mxu0 0.0
    %407 = vmatprep.subr.mxu0 0.0
    %408 = vmatpush1.msra.mxu0 0.0
    %409 = vmatprep.subr.mxu0 0.0
    %410 = vmatpush1.msra.mxu0 0.0
    %411 = vmatprep.subr.mxu0 0.0
    %412 = vmatpush1.msra.mxu0 0.0
    %413 = vmatprep.subr.mxu0 0.0
    %414 = vmatpush1.msra.mxu0 0.0
    %415 = vmatprep.subr.mxu0 0.0
    %416 = vmatpush1.msra.mxu0 0.0
    %417 = vmatprep.subr.mxu0 0.0
    %418 = vmatpush1.msra.mxu0 0.0
    %419 = vmatprep.subr.mxu0 0.0
    %420 = vmatpush1.msra.mxu0 %v384
    %421 = vmatprep.subr.mxu0 0.0
    %422 = vmatpush2.msra.mxu0 0.0
    %423 = vmatprep.subr.mxu0 0.0
    %424 = vmatpush2.msra.mxu0 0.0
    %425 = vmatprep.subr.mxu0 0.0
    %426 = vmatpush2.msra.mxu0 0.0
    %427 = vmatprep.subr.mxu0 0.0
    %428 = vmatpush2.msra.mxu0 0.0
    %429 = vmatprep.subr.mxu0 0.0
    %430 = vmatpush2.msra.mxu0 0.0
    %431 = vmatprep.subr.mxu0 0.0
    %432 = vmatpush2.msra.mxu0 0.0
    %433 = vmatprep.subr.mxu0 0.0
    %434 = vmatpush2.msra.mxu0 0.0
    %435 = vmatprep.subr.mxu0 0.0
    %436 = vmatpush2.msra.mxu0 0.0
    %437 = vmatprep.subr.mxu0 0.0
    %438 = vmatpush2.msra.mxu0 0.0
    %439 = vmatprep.subr.mxu0 0.0
    %440 = vmatpush2.msra.mxu0 0.0
    %441 = vmatprep.subr.mxu0 0.0
    %442 = vmatpush2.msra.mxu0 0.0
    %443 = vmatprep.subr.mxu0 0.0
    %444 = vmatpush2.msra.mxu0 0.0
    %445 = vmatprep.subr.mxu0 0.0
    %446 = vmatpush2.msra.mxu0 0.0
    %447 = vmatprep.subr.mxu0 0.0
    %448 = vmatpush2.msra.mxu0 0.0
    %449 = vmatprep.subr.mxu0 0.0
    %450 = vmatpush2.msra.mxu0 0.0
    %451 = vmatprep.subr.mxu0 0.0
    %452 = vmatpush2.msra.mxu0 0.0
    %453 = vmatprep.mubr.f32.mxu0 0.0
    %454 = vmatmul.mubr.f32.gmra.mxu0 %v387
    %v455 = vpop.f32.mrf.mxu0
    %v456 = vadd.f32 0.0, %v455
    %v457 = vpop.f32.mrf.mxu0
    %458 = vdwg.mxu0
    %v459 = vld [vmem:[%s2] sm:$0xff]
    %460 = vrot.lane.b32.xlu0 %v122, 120
    %v461 = vpop.permute.xlu0 %460
    %462 = vrot.lane.b32.xlu0 %v122, 88
    %v463 = vpop.permute.xlu0 %462
    %v464 = vsel %vm133, %v461, 0
    %v466 = vsel %vm133, %v463, 0
    %468 = vmatprep.subr.mxu0 0.0
    %469 = vmatpush1.xpose.msra.mxu0 0.0
    %470 = vmatprep.subr.mxu0 0.0
    %471 = vmatpush1.xpose.msra.mxu0 0.0
    %472 = vmatprep.subr.mxu0 0.0
    %473 = vmatpush1.xpose.msra.mxu0 0.0
    %474 = vmatprep.subr.mxu0 0.0
    %475 = vmatpush1.xpose.msra.mxu0 0.0
    %476 = vmatprep.subr.mxu0 0.0
    %477 = vmatpush1.xpose.msra.mxu0 0.0
    %478 = vmatprep.subr.mxu0 0.0
    %479 = vmatpush1.xpose.msra.mxu0 0.0
    %480 = vmatprep.subr.mxu0 0.0
    %481 = vmatpush1.xpose.msra.mxu0 0.0
    %482 = vmatprep.subr.mxu0 0.0
    %483 = vmatpush1.xpose.msra.mxu0 0.0
    %484 = vmatprep.subr.mxu0 0.0
    %485 = vmatpush1.xpose.msra.mxu0 0.0
    %486 = vmatprep.subr.mxu0 0.0
    %487 = vmatpush1.xpose.msra.mxu0 0.0
    %488 = vmatprep.subr.mxu0 0.0
    %489 = vmatpush1.xpose.msra.mxu0 0.0
    %490 = vmatprep.subr.mxu0 0.0
    %491 = vmatpush1.xpose.msra.mxu0 0.0
    %492 = vmatprep.subr.mxu0 0.0
    %493 = vmatpush1.xpose.msra.mxu0 0.0
    %494 = vmatprep.subr.mxu0 0.0
    %495 = vmatpush1.xpose.msra.mxu0 0.0
    %496 = vmatprep.subr.mxu0 0.0
    %497 = vmatpush1.xpose.msra.mxu0 0.0
    %498 = vmatprep.subr.mxu0 0.0
    %499 = vmatpush1.xpose.msra.mxu0 %v466
    %500 = vmatprep.subr.mxu0 0.0
    %501 = vmatpush2.xpose.msra.mxu0 0.0
    %502 = vmatprep.subr.mxu0 0.0
    %503 = vmatpush2.xpose.msra.mxu0 0.0
    %504 = vmatprep.subr.mxu0 0.0
    %505 = vmatpush2.xpose.msra.mxu0 0.0
    %506 = vmatprep.subr.mxu0 0.0
    %507 = vmatpush2.xpose.msra.mxu0 0.0
    %508 = vmatprep.subr.mxu0 0.0
    %509 = vmatpush2.xpose.msra.mxu0 0.0
    %510 = vmatprep.subr.mxu0 0.0
    %511 = vmatpush2.xpose.msra.mxu0 0.0
    %512 = vmatprep.subr.mxu0 0.0
    %513 = vmatpush2.xpose.msra.mxu0 0.0
    %514 = vmatprep.subr.mxu0 0.0
    %515 = vmatpush2.xpose.msra.mxu0 0.0
    %516 = vmatprep.subr.mxu0 0.0
    %517 = vmatpush2.xpose.msra.mxu0 0.0
    %518 = vmatprep.subr.mxu0 0.0
    %519 = vmatpush2.xpose.msra.mxu0 0.0
    %520 = vmatprep.subr.mxu0 0.0
    %521 = vmatpush2.xpose.msra.mxu0 0.0
    %522 = vmatprep.subr.mxu0 0.0
    %523 = vmatpush2.xpose.msra.mxu0 0.0
    %524 = vmatprep.subr.mxu0 0.0
    %525 = vmatpush2.xpose.msra.mxu0 0.0
    %526 = vmatprep.subr.mxu0 0.0
    %527 = vmatpush2.xpose.msra.mxu0 0.0
    %528 = vmatprep.subr.mxu0 0.0
    %529 = vmatpush2.xpose.msra.mxu0 0.0
    %530 = vmatprep.subr.mxu0 0.0
    %531 = vmatpush2.xpose.msra.mxu0 0.0
    %532 = vmatprep.mubr.f32.mxu0 0.0
    %533 = vmatmul.mubr.f32.gmra.mxu0 %v464
    %v534 = vpop.f32.mrf.mxu0
    %v535 = vadd.f32 0.0, %v534
    %v536 = vpop.f32.mrf.mxu0
    %537 = vdwg.mxu0
    %538 = vrot.lane.b32.xlu0 %v127, 120
    %v539 = vpop.permute.xlu0 %538
    %540 = vrot.lane.b32.xlu0 %v127, 88
    %v541 = vpop.permute.xlu0 %540
    %v542 = vsel %vm133, %v539, 0
    %v544 = vsel %vm133, %v541, 0
    %546 = vmatprep.subr.mxu0 0.0
    %547 = vmatpush1.xpose.msra.mxu0 0.0
    %548 = vmatprep.subr.mxu0 0.0
    %549 = vmatpush1.xpose.msra.mxu0 0.0
    %550 = vmatprep.subr.mxu0 0.0
    %551 = vmatpush1.xpose.msra.mxu0 0.0
    %552 = vmatprep.subr.mxu0 0.0
    %553 = vmatpush1.xpose.msra.mxu0 0.0
    %554 = vmatprep.subr.mxu0 0.0
    %555 = vmatpush1.xpose.msra.mxu0 0.0
    %556 = vmatprep.subr.mxu0 0.0
    %557 = vmatpush1.xpose.msra.mxu0 0.0
    %558 = vmatprep.subr.mxu0 0.0
    %559 = vmatpush1.xpose.msra.mxu0 0.0
    %560 = vmatprep.subr.mxu0 0.0
    %561 = vmatpush1.xpose.msra.mxu0 0.0
    %562 = vmatprep.subr.mxu0 0.0
    %563 = vmatpush1.xpose.msra.mxu0 0.0
    %564 = vmatprep.subr.mxu0 0.0
    %565 = vmatpush1.xpose.msra.mxu0 0.0
    %566 = vmatprep.subr.mxu0 0.0
    %567 = vmatpush1.xpose.msra.mxu0 0.0
    %568 = vmatprep.subr.mxu0 0.0
    %569 = vmatpush1.xpose.msra.mxu0 0.0
    %570 = vmatprep.subr.mxu0 0.0
    %571 = vmatpush1.xpose.msra.mxu0 0.0
    %572 = vmatprep.subr.mxu0 0.0
    %573 = vmatpush1.xpose.msra.mxu0 0.0
    %574 = vmatprep.subr.mxu0 0.0
    %575 = vmatpush1.xpose.msra.mxu0 0.0
    %576 = vmatprep.subr.mxu0 0.0
    %577 = vmatpush1.xpose.msra.mxu0 %v544
    %578 = vmatprep.subr.mxu0 0.0
    %579 = vmatpush2.xpose.msra.mxu0 0.0
    %580 = vmatprep.subr.mxu0 0.0
    %581 = vmatpush2.xpose.msra.mxu0 0.0
    %582 = vmatprep.subr.mxu0 0.0
    %583 = vmatpush2.xpose.msra.mxu0 0.0
    %584 = vmatprep.subr.mxu0 0.0
    %585 = vmatpush2.xpose.msra.mxu0 0.0
    %586 = vmatprep.subr.mxu0 0.0
    %587 = vmatpush2.xpose.msra.mxu0 0.0
    %588 = vmatprep.subr.mxu0 0.0
    %589 = vmatpush2.xpose.msra.mxu0 0.0
    %590 = vmatprep.subr.mxu0 0.0
    %591 = vmatpush2.xpose.msra.mxu0 0.0
    %592 = vmatprep.subr.mxu0 0.0
    %593 = vmatpush2.xpose.msra.mxu0 0.0
    %594 = vmatprep.subr.mxu0 0.0
    %595 = vmatpush2.xpose.msra.mxu0 0.0
    %596 = vmatprep.subr.mxu0 0.0
    %597 = vmatpush2.xpose.msra.mxu0 0.0
    %598 = vmatprep.subr.mxu0 0.0
    %599 = vmatpush2.xpose.msra.mxu0 0.0
    %600 = vmatprep.subr.mxu0 0.0
    %601 = vmatpush2.xpose.msra.mxu0 0.0
    %602 = vmatprep.subr.mxu0 0.0
    %603 = vmatpush2.xpose.msra.mxu0 0.0
    %604 = vmatprep.subr.mxu0 0.0
    %605 = vmatpush2.xpose.msra.mxu0 0.0
    %606 = vmatprep.subr.mxu0 0.0
    %607 = vmatpush2.xpose.msra.mxu0 0.0
    %608 = vmatprep.subr.mxu0 0.0
    %609 = vmatpush2.xpose.msra.mxu0 0.0
    %610 = vmatprep.mubr.f32.mxu0 0.0
    %611 = vmatmul.mubr.f32.gmra.mxu0 %v542
    %v612 = vpop.f32.mrf.mxu0
    %v613 = vadd.f32 0.0, %v612
    %v614 = vpop.f32.mrf.mxu0
    %615 = vdwg.mxu0
    %v616 = vsel %vm133, %v535, -inf
    %617 = vmax.xlane.f32.xlu0 %v616
    %v618 = vpop.xlane.xlu0 %617
    %v619 = vsel %vm133, %v613, -inf
    %620 = vmax.xlane.f32.xlu0 %v619
    %v621 = vpop.xlane.xlu0 %620
    %v622 = vsub.f32 %v535, %v618
    %v623 = vsub.f32 %v613, %v621
    %v624 = vmul.f32 %v622, 1.442695
    %v625 = vpow.pop %v624
    %v626 = vmul.f32 %v623, 1.442695
    %v627 = vpow.pop %v626
    %v628 = vsel %vm133, %v625, 0.0
    %629 = vadd.xlane.f32.xlu0 %v628
    %v630 = vpop.xlane.xlu0 %629
    %v631 = vsel %vm133, %v627, 0.0
    %632 = vadd.xlane.f32.xlu0 %v631
    %v633 = vpop.xlane.xlu0 %632
    %v634 = vrcp.pop %v630
    %v635 = vrcp.pop %v633
    %v636 = vmul.f32 %v625, %v634
    %v637 = vmul.f32 %v627, %v635
    %638 = vrot.lane.b32.xlu0 %v122, 56
    %v639 = vpop.permute.xlu0 %638
    %v642 = vsel %vm133, %v636, 0
    %644 = vmatprep.subr.mxu0 0.0
    %645 = vmatpush1.msra.mxu0 0.0
    %646 = vmatprep.subr.mxu0 0.0
    %647 = vmatpush1.msra.mxu0 0.0
    %648 = vmatprep.subr.mxu0 0.0
    %649 = vmatpush1.msra.mxu0 0.0
    %650 = vmatprep.subr.mxu0 0.0
    %651 = vmatpush1.msra.mxu0 0.0
    %652 = vmatprep.subr.mxu0 0.0
    %653 = vmatpush1.msra.mxu0 0.0
    %654 = vmatprep.subr.mxu0 0.0
    %655 = vmatpush1.msra.mxu0 0.0
    %656 = vmatprep.subr.mxu0 0.0
    %657 = vmatpush1.msra.mxu0 0.0
    %658 = vmatprep.subr.mxu0 0.0
    %659 = vmatpush1.msra.mxu0 0.0
    %660 = vmatprep.subr.mxu0 0.0
    %661 = vmatpush1.msra.mxu0 0.0
    %662 = vmatprep.subr.mxu0 0.0
    %663 = vmatpush1.msra.mxu0 0.0
    %664 = vmatprep.subr.mxu0 0.0
    %665 = vmatpush1.msra.mxu0 0.0
    %666 = vmatprep.subr.mxu0 0.0
    %667 = vmatpush1.msra.mxu0 0.0
    %668 = vmatprep.subr.mxu0 0.0
    %669 = vmatpush1.msra.mxu0 0.0
    %670 = vmatprep.subr.mxu0 0.0
    %671 = vmatpush1.msra.mxu0 0.0
    %672 = vmatprep.subr.mxu0 0.0
    %673 = vmatpush1.msra.mxu0 0.0
    %674 = vmatprep.subr.mxu0 0.0
    %675 = vmatpush1.msra.mxu0 %v639
    %676 = vmatprep.subr.mxu0 0.0
    %677 = vmatpush2.msra.mxu0 0.0
    %678 = vmatprep.subr.mxu0 0.0
    %679 = vmatpush2.msra.mxu0 0.0
    %680 = vmatprep.subr.mxu0 0.0
    %681 = vmatpush2.msra.mxu0 0.0
    %682 = vmatprep.subr.mxu0 0.0
    %683 = vmatpush2.msra.mxu0 0.0
    %684 = vmatprep.subr.mxu0 0.0
    %685 = vmatpush2.msra.mxu0 0.0
    %686 = vmatprep.subr.mxu0 0.0
    %687 = vmatpush2.msra.mxu0 0.0
    %688 = vmatprep.subr.mxu0 0.0
    %689 = vmatpush2.msra.mxu0 0.0
    %690 = vmatprep.subr.mxu0 0.0
    %691 = vmatpush2.msra.mxu0 0.0
    %692 = vmatprep.subr.mxu0 0.0
    %693 = vmatpush2.msra.mxu0 0.0
    %694 = vmatprep.subr.mxu0 0.0
    %695 = vmatpush2.msra.mxu0 0.0
    %696 = vmatprep.subr.mxu0 0.0
    %697 = vmatpush2.msra.mxu0 0.0
    %698 = vmatprep.subr.mxu0 0.0
    %699 = vmatpush2.msra.mxu0 0.0
    %700 = vmatprep.subr.mxu0 0.0
    %701 = vmatpush2.msra.mxu0 0.0
    %702 = vmatprep.subr.mxu0 0.0
    %703 = vmatpush2.msra.mxu0 0.0
    %704 = vmatprep.subr.mxu0 0.0
    %705 = vmatpush2.msra.mxu0 0.0
    %706 = vmatprep.subr.mxu0 0.0
    %707 = vmatpush2.msra.mxu0 0.0
    %708 = vmatprep.mubr.f32.mxu0 0.0
    %709 = vmatmul.mubr.f32.gmra.mxu0 %v642
    %v710 = vpop.f32.mrf.mxu0
    %v711 = vadd.f32 0.0, %v710
    %v712 = vpop.f32.mrf.mxu0
    %713 = vdwg.mxu0
    %714 = vrot.lane.b32.xlu0 %v127, 56
    %v715 = vpop.permute.xlu0 %714
    %v718 = vsel %vm133, %v637, 0
    %720 = vmatprep.subr.mxu0 0.0
    %721 = vmatpush1.msra.mxu0 0.0
    %722 = vmatprep.subr.mxu0 0.0
    %723 = vmatpush1.msra.mxu0 0.0
    %724 = vmatprep.subr.mxu0 0.0
    %725 = vmatpush1.msra.mxu0 0.0
    %726 = vmatprep.subr.mxu0 0.0
    %727 = vmatpush1.msra.mxu0 0.0
    %728 = vmatprep.subr.mxu0 0.0
    %729 = vmatpush1.msra.mxu0 0.0
    %730 = vmatprep.subr.mxu0 0.0
    %731 = vmatpush1.msra.mxu0 0.0
    %732 = vmatprep.subr.mxu0 0.0
    %733 = vmatpush1.msra.mxu0 0.0
    %734 = vmatprep.subr.mxu0 0.0
    %735 = vmatpush1.msra.mxu0 0.0
    %736 = vmatprep.subr.mxu0 0.0
    %737 = vmatpush1.msra.mxu0 0.0
    %738 = vmatprep.subr.mxu0 0.0
    %739 = vmatpush1.msra.mxu0 0.0
    %740 = vmatprep.subr.mxu0 0.0
    %741 = vmatpush1.msra.mxu0 0.0
    %742 = vmatprep.subr.mxu0 0.0
    %743 = vmatpush1.msra.mxu0 0.0
    %744 = vmatprep.subr.mxu0 0.0
    %745 = vmatpush1.msra.mxu0 0.0
    %746 = vmatprep.subr.mxu0 0.0
    %747 = vmatpush1.msra.mxu0 0.0
    %748 = vmatprep.subr.mxu0 0.0
    %749 = vmatpush1.msra.mxu0 0.0
    %750 = vmatprep.subr.mxu0 0.0
    %751 = vmatpush1.msra.mxu0 %v715
    %752 = vmatprep.subr.mxu0 0.0
    %753 = vmatpush2.msra.mxu0 0.0
    %754 = vmatprep.subr.mxu0 0.0
    %755 = vmatpush2.msra.mxu0 0.0
    %756 = vmatprep.subr.mxu0 0.0
    %757 = vmatpush2.msra.mxu0 0.0
    %758 = vmatprep.subr.mxu0 0.0
    %759 = vmatpush2.msra.mxu0 0.0
    %760 = vmatprep.subr.mxu0 0.0
    %761 = vmatpush2.msra.mxu0 0.0
    %762 = vmatprep.subr.mxu0 0.0
    %763 = vmatpush2.msra.mxu0 0.0
    %764 = vmatprep.subr.mxu0 0.0
    %765 = vmatpush2.msra.mxu0 0.0
    %766 = vmatprep.subr.mxu0 0.0
    %767 = vmatpush2.msra.mxu0 0.0
    %768 = vmatprep.subr.mxu0 0.0
    %769 = vmatpush2.msra.mxu0 0.0
    %770 = vmatprep.subr.mxu0 0.0
    %771 = vmatpush2.msra.mxu0 0.0
    %772 = vmatprep.subr.mxu0 0.0
    %773 = vmatpush2.msra.mxu0 0.0
    %774 = vmatprep.subr.mxu0 0.0
    %775 = vmatpush2.msra.mxu0 0.0
    %776 = vmatprep.subr.mxu0 0.0
    %777 = vmatpush2.msra.mxu0 0.0
    %778 = vmatprep.subr.mxu0 0.0
    %779 = vmatpush2.msra.mxu0 0.0
    %780 = vmatprep.subr.mxu0 0.0
    %781 = vmatpush2.msra.mxu0 0.0
    %782 = vmatprep.subr.mxu0 0.0
    %783 = vmatpush2.msra.mxu0 0.0
    %784 = vmatprep.mubr.f32.mxu0 0.0
    %785 = vmatmul.mubr.f32.gmra.mxu0 %v718
    %v786 = vpop.f32.mrf.mxu0
    %v787 = vadd.f32 0.0, %v786
    %v788 = vpop.f32.mrf.mxu0
    %789 = vdwg.mxu0
    %v790 = vld [vmem:[%s2 + $0x8] sm:$0xff]
    %v792 = vsel %vm133, %v711, 0
    %v795 = vsel %vm133, %v787, 0
    %797 = vmatprep.subr.mxu0 0.0
    %798 = vmatpush1.msra.mxu0 0.0
    %799 = vmatprep.subr.mxu0 0.0
    %800 = vmatpush1.msra.mxu0 0.0
    %801 = vmatprep.subr.mxu0 0.0
    %802 = vmatpush1.msra.mxu0 0.0
    %803 = vmatprep.subr.mxu0 0.0
    %804 = vmatpush1.msra.mxu0 0.0
    %805 = vmatprep.subr.mxu0 0.0
    %806 = vmatpush1.msra.mxu0 0.0
    %807 = vmatprep.subr.mxu0 0.0
    %808 = vmatpush1.msra.mxu0 0.0
    %809 = vmatprep.subr.mxu0 0.0
    %810 = vmatpush1.msra.mxu0 0.0
    %811 = vmatprep.subr.mxu0 0.0
    %812 = vmatpush1.msra.mxu0 0.0
    %813 = vmatprep.subr.mxu0 0.0
    %814 = vmatpush1.msra.mxu0 0.0
    %815 = vmatprep.subr.mxu0 0.0
    %816 = vmatpush1.msra.mxu0 0.0
    %817 = vmatprep.subr.mxu0 0.0
    %818 = vmatpush1.msra.mxu0 0.0
    %819 = vmatprep.subr.mxu0 0.0
    %820 = vmatpush1.msra.mxu0 0.0
    %821 = vmatprep.subr.mxu0 0.0
    %822 = vmatpush1.msra.mxu0 0.0
    %823 = vmatprep.subr.mxu0 0.0
    %824 = vmatpush1.msra.mxu0 0.0
    %825 = vmatprep.subr.mxu0 0.0
    %826 = vmatpush1.msra.mxu0 0.0
    %827 = vmatprep.subr.mxu0 0.0
    %828 = vmatpush1.msra.mxu0 %v790
    %829 = vmatprep.subr.mxu0 0.0
    %830 = vmatpush2.msra.mxu0 0.0
    %831 = vmatprep.subr.mxu0 0.0
    %832 = vmatpush2.msra.mxu0 0.0
    %833 = vmatprep.subr.mxu0 0.0
    %834 = vmatpush2.msra.mxu0 0.0
    %835 = vmatprep.subr.mxu0 0.0
    %836 = vmatpush2.msra.mxu0 0.0
    %837 = vmatprep.subr.mxu0 0.0
    %838 = vmatpush2.msra.mxu0 0.0
    %839 = vmatprep.subr.mxu0 0.0
    %840 = vmatpush2.msra.mxu0 0.0
    %841 = vmatprep.subr.mxu0 0.0
    %842 = vmatpush2.msra.mxu0 0.0
    %843 = vmatprep.subr.mxu0 0.0
    %844 = vmatpush2.msra.mxu0 0.0
    %845 = vmatprep.subr.mxu0 0.0
    %846 = vmatpush2.msra.mxu0 0.0
    %847 = vmatprep.subr.mxu0 0.0
    %848 = vmatpush2.msra.mxu0 0.0
    %849 = vmatprep.subr.mxu0 0.0
    %850 = vmatpush2.msra.mxu0 0.0
    %851 = vmatprep.subr.mxu0 0.0
    %852 = vmatpush2.msra.mxu0 0.0
    %853 = vmatprep.subr.mxu0 0.0
    %854 = vmatpush2.msra.mxu0 0.0
    %855 = vmatprep.subr.mxu0 0.0
    %856 = vmatpush2.msra.mxu0 0.0
    %857 = vmatprep.subr.mxu0 0.0
    %858 = vmatpush2.msra.mxu0 0.0
    %859 = vmatprep.subr.mxu0 0.0
    %860 = vmatpush2.msra.mxu0 0.0
    %861 = vmatprep.mubr.f32.mxu0 0.0
    %862 = vmatmul.mubr.f32.gmra.mxu0 %v792
    %v863 = vpop.f32.mrf.mxu0
    %v864 = vadd.f32 0.0, %v863
    %v865 = vpop.f32.mrf.mxu0
    %866 = vmatprep.mubr.f32.mxu0 0.0
    %867 = vmatmul.mubr.f32.gmra.mxu0 %v795
    %v868 = vpop.f32.mrf.mxu0
    %v869 = vadd.f32 0.0, %v868
    %v870 = vpop.f32.mrf.mxu0
    %871 = vdwg.mxu0
    %v873 = vsel %vm133, %v380, 0
    %v876 = vsel %vm133, %v456, 0
    %878 = vmatprep.subr.mxu0 0.0
    %879 = vmatpush1.msra.mxu0 0.0
    %880 = vmatprep.subr.mxu0 0.0
    %881 = vmatpush1.msra.mxu0 0.0
    %882 = vmatprep.subr.mxu0 0.0
    %883 = vmatpush1.msra.mxu0 0.0
    %884 = vmatprep.subr.mxu0 0.0
    %885 = vmatpush1.msra.mxu0 0.0
    %886 = vmatprep.subr.mxu0 0.0
    %887 = vmatpush1.msra.mxu0 0.0
    %888 = vmatprep.subr.mxu0 0.0
    %889 = vmatpush1.msra.mxu0 0.0
    %890 = vmatprep.subr.mxu0 0.0
    %891 = vmatpush1.msra.mxu0 0.0
    %892 = vmatprep.subr.mxu0 0.0
    %893 = vmatpush1.msra.mxu0 0.0
    %894 = vmatprep.subr.mxu0 0.0
    %895 = vmatpush1.msra.mxu0 0.0
    %896 = vmatprep.subr.mxu0 0.0
    %897 = vmatpush1.msra.mxu0 0.0
    %898 = vmatprep.subr.mxu0 0.0
    %899 = vmatpush1.msra.mxu0 0.0
    %900 = vmatprep.subr.mxu0 0.0
    %901 = vmatpush1.msra.mxu0 0.0
    %902 = vmatprep.subr.mxu0 0.0
    %903 = vmatpush1.msra.mxu0 0.0
    %904 = vmatprep.subr.mxu0 0.0
    %905 = vmatpush1.msra.mxu0 0.0
    %906 = vmatprep.subr.mxu0 0.0
    %907 = vmatpush1.msra.mxu0 0.0
    %908 = vmatprep.subr.mxu0 0.0
    %909 = vmatpush1.msra.mxu0 %v459
    %910 = vmatprep.subr.mxu0 0.0
    %911 = vmatpush2.msra.mxu0 0.0
    %912 = vmatprep.subr.mxu0 0.0
    %913 = vmatpush2.msra.mxu0 0.0
    %914 = vmatprep.subr.mxu0 0.0
    %915 = vmatpush2.msra.mxu0 0.0
    %916 = vmatprep.subr.mxu0 0.0
    %917 = vmatpush2.msra.mxu0 0.0
    %918 = vmatprep.subr.mxu0 0.0
    %919 = vmatpush2.msra.mxu0 0.0
    %920 = vmatprep.subr.mxu0 0.0
    %921 = vmatpush2.msra.mxu0 0.0
    %922 = vmatprep.subr.mxu0 0.0
    %923 = vmatpush2.msra.mxu0 0.0
    %924 = vmatprep.subr.mxu0 0.0
    %925 = vmatpush2.msra.mxu0 0.0
    %926 = vmatprep.subr.mxu0 0.0
    %927 = vmatpush2.msra.mxu0 0.0
    %928 = vmatprep.subr.mxu0 0.0
    %929 = vmatpush2.msra.mxu0 0.0
    %930 = vmatprep.subr.mxu0 0.0
    %931 = vmatpush2.msra.mxu0 0.0
    %932 = vmatprep.subr.mxu0 0.0
    %933 = vmatpush2.msra.mxu0 0.0
    %934 = vmatprep.subr.mxu0 0.0
    %935 = vmatpush2.msra.mxu0 0.0
    %936 = vmatprep.subr.mxu0 0.0
    %937 = vmatpush2.msra.mxu0 0.0
    %938 = vmatprep.subr.mxu0 0.0
    %939 = vmatpush2.msra.mxu0 0.0
    %940 = vmatprep.subr.mxu0 0.0
    %941 = vmatpush2.msra.mxu0 0.0
    %942 = vmatprep.mubr.f32.mxu0 0.0
    %943 = vmatmul.mubr.f32.gmra.mxu0 %v873
    %v944 = vpop.f32.mrf.mxu0
    %v945 = vadd.f32 %v864, %v944
    %v946 = vpop.f32.mrf.mxu0
    %947 = vmatprep.mubr.f32.mxu0 0.0
    %948 = vmatmul.mubr.f32.gmra.mxu0 %v876
    %v949 = vpop.f32.mrf.mxu0
    %v950 = vadd.f32 %v869, %v949
    %v951 = vpop.f32.mrf.mxu0
    %952 = vdwg.mxu0
    %953 = vrot.lane.b32.xlu0 %v122, 112
    %v954 = vpop.permute.xlu0 %953
    %955 = vrot.lane.b32.xlu0 %v122, 80
    %v956 = vpop.permute.xlu0 %955
    %v957 = vsel %vm133, %v954, 0
    %v959 = vsel %vm133, %v956, 0
    %961 = vmatprep.subr.mxu0 0.0
    %962 = vmatpush1.xpose.msra.mxu0 0.0
    %963 = vmatprep.subr.mxu0 0.0
    %964 = vmatpush1.xpose.msra.mxu0 0.0
    %965 = vmatprep.subr.mxu0 0.0
    %966 = vmatpush1.xpose.msra.mxu0 0.0
    %967 = vmatprep.subr.mxu0 0.0
    %968 = vmatpush1.xpose.msra.mxu0 0.0
    %969 = vmatprep.subr.mxu0 0.0
    %970 = vmatpush1.xpose.msra.mxu0 0.0
    %971 = vmatprep.subr.mxu0 0.0
    %972 = vmatpush1.xpose.msra.mxu0 0.0
    %973 = vmatprep.subr.mxu0 0.0
    %974 = vmatpush1.xpose.msra.mxu0 0.0
    %975 = vmatprep.subr.mxu0 0.0
    %976 = vmatpush1.xpose.msra.mxu0 0.0
    %977 = vmatprep.subr.mxu0 0.0
    %978 = vmatpush1.xpose.msra.mxu0 0.0
    %979 = vmatprep.subr.mxu0 0.0
    %980 = vmatpush1.xpose.msra.mxu0 0.0
    %981 = vmatprep.subr.mxu0 0.0
    %982 = vmatpush1.xpose.msra.mxu0 0.0
    %983 = vmatprep.subr.mxu0 0.0
    %984 = vmatpush1.xpose.msra.mxu0 0.0
    %985 = vmatprep.subr.mxu0 0.0
    %986 = vmatpush1.xpose.msra.mxu0 0.0
    %987 = vmatprep.subr.mxu0 0.0
    %988 = vmatpush1.xpose.msra.mxu0 0.0
    %989 = vmatprep.subr.mxu0 0.0
    %990 = vmatpush1.xpose.msra.mxu0 0.0
    %991 = vmatprep.subr.mxu0 0.0
    %992 = vmatpush1.xpose.msra.mxu0 %v959
    %993 = vmatprep.subr.mxu0 0.0
    %994 = vmatpush2.xpose.msra.mxu0 0.0
    %995 = vmatprep.subr.mxu0 0.0
    %996 = vmatpush2.xpose.msra.mxu0 0.0
    %997 = vmatprep.subr.mxu0 0.0
    %998 = vmatpush2.xpose.msra.mxu0 0.0
    %999 = vmatprep.subr.mxu0 0.0
    %1000 = vmatpush2.xpose.msra.mxu0 0.0
    %1001 = vmatprep.subr.mxu0 0.0
    %1002 = vmatpush2.xpose.msra.mxu0 0.0
    %1003 = vmatprep.subr.mxu0 0.0
    %1004 = vmatpush2.xpose.msra.mxu0 0.0
    %1005 = vmatprep.subr.mxu0 0.0
    %1006 = vmatpush2.xpose.msra.mxu0 0.0
    %1007 = vmatprep.subr.mxu0 0.0
    %1008 = vmatpush2.xpose.msra.mxu0 0.0
    %1009 = vmatprep.subr.mxu0 0.0
    %1010 = vmatpush2.xpose.msra.mxu0 0.0
    %1011 = vmatprep.subr.mxu0 0.0
    %1012 = vmatpush2.xpose.msra.mxu0 0.0
    %1013 = vmatprep.subr.mxu0 0.0
    %1014 = vmatpush2.xpose.msra.mxu0 0.0
    %1015 = vmatprep.subr.mxu0 0.0
    %1016 = vmatpush2.xpose.msra.mxu0 0.0
    %1017 = vmatprep.subr.mxu0 0.0
    %1018 = vmatpush2.xpose.msra.mxu0 0.0
    %1019 = vmatprep.subr.mxu0 0.0
    %1020 = vmatpush2.xpose.msra.mxu0 0.0
    %1021 = vmatprep.subr.mxu0 0.0
    %1022 = vmatpush2.xpose.msra.mxu0 0.0
    %1023 = vmatprep.subr.mxu0 0.0
    %1024 = vmatpush2.xpose.msra.mxu0 0.0
    %1025 = vmatprep.mubr.f32.mxu0 0.0
    %1026 = vmatmul.mubr.f32.gmra.mxu0 %v957
    %v1027 = vpop.f32.mrf.mxu0
    %v1028 = vadd.f32 0.0, %v1027
    %v1029 = vpop.f32.mrf.mxu0
    %1030 = vdwg.mxu0
    %1031 = vrot.lane.b32.xlu0 %v127, 112
    %v1032 = vpop.permute.xlu0 %1031
    %1033 = vrot.lane.b32.xlu0 %v127, 80
    %v1034 = vpop.permute.xlu0 %1033
    %v1035 = vsel %vm133, %v1032, 0
    %v1037 = vsel %vm133, %v1034, 0
    %1039 = vmatprep.subr.mxu0 0.0
    %1040 = vmatpush1.xpose.msra.mxu0 0.0
    %1041 = vmatprep.subr.mxu0 0.0
    %1042 = vmatpush1.xpose.msra.mxu0 0.0
    %1043 = vmatprep.subr.mxu0 0.0
    %1044 = vmatpush1.xpose.msra.mxu0 0.0
    %1045 = vmatprep.subr.mxu0 0.0
    %1046 = vmatpush1.xpose.msra.mxu0 0.0
    %1047 = vmatprep.subr.mxu0 0.0
    %1048 = vmatpush1.xpose.msra.mxu0 0.0
    %1049 = vmatprep.subr.mxu0 0.0
    %1050 = vmatpush1.xpose.msra.mxu0 0.0
    %1051 = vmatprep.subr.mxu0 0.0
    %1052 = vmatpush1.xpose.msra.mxu0 0.0
    %1053 = vmatprep.subr.mxu0 0.0
    %1054 = vmatpush1.xpose.msra.mxu0 0.0
    %1055 = vmatprep.subr.mxu0 0.0
    %1056 = vmatpush1.xpose.msra.mxu0 0.0
    %1057 = vmatprep.subr.mxu0 0.0
    %1058 = vmatpush1.xpose.msra.mxu0 0.0
    %1059 = vmatprep.subr.mxu0 0.0
    %1060 = vmatpush1.xpose.msra.mxu0 0.0
    %1061 = vmatprep.subr.mxu0 0.0
    %1062 = vmatpush1.xpose.msra.mxu0 0.0
    %1063 = vmatprep.subr.mxu0 0.0
    %1064 = vmatpush1.xpose.msra.mxu0 0.0
    %1065 = vmatprep.subr.mxu0 0.0
    %1066 = vmatpush1.xpose.msra.mxu0 0.0
    %1067 = vmatprep.subr.mxu0 0.0
    %1068 = vmatpush1.xpose.msra.mxu0 0.0
    %1069 = vmatprep.subr.mxu0 0.0
    %1070 = vmatpush1.xpose.msra.mxu0 %v1037
    %1071 = vmatprep.subr.mxu0 0.0
    %1072 = vmatpush2.xpose.msra.mxu0 0.0
    %1073 = vmatprep.subr.mxu0 0.0
    %1074 = vmatpush2.xpose.msra.mxu0 0.0
    %1075 = vmatprep.subr.mxu0 0.0
    %1076 = vmatpush2.xpose.msra.mxu0 0.0
    %1077 = vmatprep.subr.mxu0 0.0
    %1078 = vmatpush2.xpose.msra.mxu0 0.0
    %1079 = vmatprep.subr.mxu0 0.0
    %1080 = vmatpush2.xpose.msra.mxu0 0.0
    %1081 = vmatprep.subr.mxu0 0.0
    %1082 = vmatpush2.xpose.msra.mxu0 0.0
    %1083 = vmatprep.subr.mxu0 0.0
    %1084 = vmatpush2.xpose.msra.mxu0 0.0
    %1085 = vmatprep.subr.mxu0 0.0
    %1086 = vmatpush2.xpose.msra.mxu0 0.0
    %1087 = vmatprep.subr.mxu0 0.0
    %1088 = vmatpush2.xpose.msra.mxu0 0.0
    %1089 = vmatprep.subr.mxu0 0.0
    %1090 = vmatpush2.xpose.msra.mxu0 0.0
    %1091 = vmatprep.subr.mxu0 0.0
    %1092 = vmatpush2.xpose.msra.mxu0 0.0
    %1093 = vmatprep.subr.mxu0 0.0
    %1094 = vmatpush2.xpose.msra.mxu0 0.0
    %1095 = vmatprep.subr.mxu0 0.0
    %1096 = vmatpush2.xpose.msra.mxu0 0.0
    %1097 = vmatprep.subr.mxu0 0.0
    %1098 = vmatpush2.xpose.msra.mxu0 0.0
    %1099 = vmatprep.subr.mxu0 0.0
    %1100 = vmatpush2.xpose.msra.mxu0 0.0
    %1101 = vmatprep.subr.mxu0 0.0
    %1102 = vmatpush2.xpose.msra.mxu0 0.0
    %1103 = vmatprep.mubr.f32.mxu0 0.0
    %1104 = vmatmul.mubr.f32.gmra.mxu0 %v1035
    %v1105 = vpop.f32.mrf.mxu0
    %v1106 = vadd.f32 0.0, %v1105
    %v1107 = vpop.f32.mrf.mxu0
    %1108 = vdwg.mxu0
    %v1109 = vsel %vm133, %v1028, -inf
    %1110 = vmax.xlane.f32.xlu0 %v1109
    %v1111 = vpop.xlane.xlu0 %1110
    %v1112 = vsel %vm133, %v1106, -inf
    %1113 = vmax.xlane.f32.xlu0 %v1112
    %v1114 = vpop.xlane.xlu0 %1113
    %v1115 = vsub.f32 %v1028, %v1111
    %v1116 = vsub.f32 %v1106, %v1114
    %v1117 = vmul.f32 %v1115, 1.442695
    %v1118 = vpow.pop %v1117
    %v1119 = vmul.f32 %v1116, 1.442695
    %v1120 = vpow.pop %v1119
    %v1121 = vsel %vm133, %v1118, 0.0
    %1122 = vadd.xlane.f32.xlu0 %v1121
    %v1123 = vpop.xlane.xlu0 %1122
    %v1124 = vsel %vm133, %v1120, 0.0
    %1125 = vadd.xlane.f32.xlu0 %v1124
    %v1126 = vpop.xlane.xlu0 %1125
    %v1127 = vrcp.pop %v1123
    %v1128 = vrcp.pop %v1126
    %v1129 = vmul.f32 %v1118, %v1127
    %v1130 = vmul.f32 %v1120, %v1128
    %1131 = vrot.lane.b32.xlu0 %v122, 48
    %v1132 = vpop.permute.xlu0 %1131
    %v1135 = vsel %vm133, %v1129, 0
    %1137 = vmatprep.subr.mxu0 0.0
    %1138 = vmatpush1.msra.mxu0 0.0
    %1139 = vmatprep.subr.mxu0 0.0
    %1140 = vmatpush1.msra.mxu0 0.0
    %1141 = vmatprep.subr.mxu0 0.0
    %1142 = vmatpush1.msra.mxu0 0.0
    %1143 = vmatprep.subr.mxu0 0.0
    %1144 = vmatpush1.msra.mxu0 0.0
    %1145 = vmatprep.subr.mxu0 0.0
    %1146 = vmatpush1.msra.mxu0 0.0
    %1147 = vmatprep.subr.mxu0 0.0
    %1148 = vmatpush1.msra.mxu0 0.0
    %1149 = vmatprep.subr.mxu0 0.0
    %1150 = vmatpush1.msra.mxu0 0.0
    %1151 = vmatprep.subr.mxu0 0.0
    %1152 = vmatpush1.msra.mxu0 0.0
    %1153 = vmatprep.subr.mxu0 0.0
    %1154 = vmatpush1.msra.mxu0 0.0
    %1155 = vmatprep.subr.mxu0 0.0
    %1156 = vmatpush1.msra.mxu0 0.0
    %1157 = vmatprep.subr.mxu0 0.0
    %1158 = vmatpush1.msra.mxu0 0.0
    %1159 = vmatprep.subr.mxu0 0.0
    %1160 = vmatpush1.msra.mxu0 0.0
    %1161 = vmatprep.subr.mxu0 0.0
    %1162 = vmatpush1.msra.mxu0 0.0
    %1163 = vmatprep.subr.mxu0 0.0
    %1164 = vmatpush1.msra.mxu0 0.0
    %1165 = vmatprep.subr.mxu0 0.0
    %1166 = vmatpush1.msra.mxu0 0.0
    %1167 = vmatprep.subr.mxu0 0.0
    %1168 = vmatpush1.msra.mxu0 %v1132
    %1169 = vmatprep.subr.mxu0 0.0
    %1170 = vmatpush2.msra.mxu0 0.0
    %1171 = vmatprep.subr.mxu0 0.0
    %1172 = vmatpush2.msra.mxu0 0.0
    %1173 = vmatprep.subr.mxu0 0.0
    %1174 = vmatpush2.msra.mxu0 0.0
    %1175 = vmatprep.subr.mxu0 0.0
    %1176 = vmatpush2.msra.mxu0 0.0
    %1177 = vmatprep.subr.mxu0 0.0
    %1178 = vmatpush2.msra.mxu0 0.0
    %1179 = vmatprep.subr.mxu0 0.0
    %1180 = vmatpush2.msra.mxu0 0.0
    %1181 = vmatprep.subr.mxu0 0.0
    %1182 = vmatpush2.msra.mxu0 0.0
    %1183 = vmatprep.subr.mxu0 0.0
    %1184 = vmatpush2.msra.mxu0 0.0
    %1185 = vmatprep.subr.mxu0 0.0
    %1186 = vmatpush2.msra.mxu0 0.0
    %1187 = vmatprep.subr.mxu0 0.0
    %1188 = vmatpush2.msra.mxu0 0.0
    %1189 = vmatprep.subr.mxu0 0.0
    %1190 = vmatpush2.msra.mxu0 0.0
    %1191 = vmatprep.subr.mxu0 0.0
    %1192 = vmatpush2.msra.mxu0 0.0
    %1193 = vmatprep.subr.mxu0 0.0
    %1194 = vmatpush2.msra.mxu0 0.0
    %1195 = vmatprep.subr.mxu0 0.0
    %1196 = vmatpush2.msra.mxu0 0.0
    %1197 = vmatprep.subr.mxu0 0.0
    %1198 = vmatpush2.msra.mxu0 0.0
    %1199 = vmatprep.subr.mxu0 0.0
    %1200 = vmatpush2.msra.mxu0 0.0
    %1201 = vmatprep.mubr.f32.mxu0 0.0
    %1202 = vmatmul.mubr.f32.gmra.mxu0 %v1135
    %v1203 = vpop.f32.mrf.mxu0
    %v1204 = vadd.f32 0.0, %v1203
    %v1205 = vpop.f32.mrf.mxu0
    %1206 = vdwg.mxu0
    %1207 = vrot.lane.b32.xlu0 %v127, 48
    %v1208 = vpop.permute.xlu0 %1207
    %v1211 = vsel %vm133, %v1130, 0
    %1213 = vmatprep.subr.mxu0 0.0
    %1214 = vmatpush1.msra.mxu0 0.0
    %1215 = vmatprep.subr.mxu0 0.0
    %1216 = vmatpush1.msra.mxu0 0.0
    %1217 = vmatprep.subr.mxu0 0.0
    %1218 = vmatpush1.msra.mxu0 0.0
    %1219 = vmatprep.subr.mxu0 0.0
    %1220 = vmatpush1.msra.mxu0 0.0
    %1221 = vmatprep.subr.mxu0 0.0
    %1222 = vmatpush1.msra.mxu0 0.0
    %1223 = vmatprep.subr.mxu0 0.0
    %1224 = vmatpush1.msra.mxu0 0.0
    %1225 = vmatprep.subr.mxu0 0.0
    %1226 = vmatpush1.msra.mxu0 0.0
    %1227 = vmatprep.subr.mxu0 0.0
    %1228 = vmatpush1.msra.mxu0 0.0
    %1229 = vmatprep.subr.mxu0 0.0
    %1230 = vmatpush1.msra.mxu0 0.0
    %1231 = vmatprep.subr.mxu0 0.0
    %1232 = vmatpush1.msra.mxu0 0.0
    %1233 = vmatprep.subr.mxu0 0.0
    %1234 = vmatpush1.msra.mxu0 0.0
    %1235 = vmatprep.subr.mxu0 0.0
    %1236 = vmatpush1.msra.mxu0 0.0
    %1237 = vmatprep.subr.mxu0 0.0
    %1238 = vmatpush1.msra.mxu0 0.0
    %1239 = vmatprep.subr.mxu0 0.0
    %1240 = vmatpush1.msra.mxu0 0.0
    %1241 = vmatprep.subr.mxu0 0.0
    %1242 = vmatpush1.msra.mxu0 0.0
    %1243 = vmatprep.subr.mxu0 0.0
    %1244 = vmatpush1.msra.mxu0 %v1208
    %1245 = vmatprep.subr.mxu0 0.0
    %1246 = vmatpush2.msra.mxu0 0.0
    %1247 = vmatprep.subr.mxu0 0.0
    %1248 = vmatpush2.msra.mxu0 0.0
    %1249 = vmatprep.subr.mxu0 0.0
    %1250 = vmatpush2.msra.mxu0 0.0
    %1251 = vmatprep.subr.mxu0 0.0
    %1252 = vmatpush2.msra.mxu0 0.0
    %1253 = vmatprep.subr.mxu0 0.0
    %1254 = vmatpush2.msra.mxu0 0.0
    %1255 = vmatprep.subr.mxu0 0.0
    %1256 = vmatpush2.msra.mxu0 0.0
    %1257 = vmatprep.subr.mxu0 0.0
    %1258 = vmatpush2.msra.mxu0 0.0
    %1259 = vmatprep.subr.mxu0 0.0
    %1260 = vmatpush2.msra.mxu0 0.0
    %1261 = vmatprep.subr.mxu0 0.0
    %1262 = vmatpush2.msra.mxu0 0.0
    %1263 = vmatprep.subr.mxu0 0.0
    %1264 = vmatpush2.msra.mxu0 0.0
    %1265 = vmatprep.subr.mxu0 0.0
    %1266 = vmatpush2.msra.mxu0 0.0
    %1267 = vmatprep.subr.mxu0 0.0
    %1268 = vmatpush2.msra.mxu0 0.0
    %1269 = vmatprep.subr.mxu0 0.0
    %1270 = vmatpush2.msra.mxu0 0.0
    %1271 = vmatprep.subr.mxu0 0.0
    %1272 = vmatpush2.msra.mxu0 0.0
    %1273 = vmatprep.subr.mxu0 0.0
    %1274 = vmatpush2.msra.mxu0 0.0
    %1275 = vmatprep.subr.mxu0 0.0
    %1276 = vmatpush2.msra.mxu0 0.0
    %1277 = vmatprep.mubr.f32.mxu0 0.0
    %1278 = vmatmul.mubr.f32.gmra.mxu0 %v1211
    %v1279 = vpop.f32.mrf.mxu0
    %v1280 = vadd.f32 0.0, %v1279
    %v1281 = vpop.f32.mrf.mxu0
    %1282 = vdwg.mxu0
    %v1283 = vld [vmem:[%s2 + $0x10] sm:$0xff]
    %v1285 = vsel %vm133, %v1204, 0
    %v1288 = vsel %vm133, %v1280, 0
    %1290 = vmatprep.subr.mxu0 0.0
    %1291 = vmatpush1.msra.mxu0 0.0
    %1292 = vmatprep.subr.mxu0 0.0
    %1293 = vmatpush1.msra.mxu0 0.0
    %1294 = vmatprep.subr.mxu0 0.0
    %1295 = vmatpush1.msra.mxu0 0.0
    %1296 = vmatprep.subr.mxu0 0.0
    %1297 = vmatpush1.msra.mxu0 0.0
    %1298 = vmatprep.subr.mxu0 0.0
    %1299 = vmatpush1.msra.mxu0 0.0
    %1300 = vmatprep.subr.mxu0 0.0
    %1301 = vmatpush1.msra.mxu0 0.0
    %1302 = vmatprep.subr.mxu0 0.0
    %1303 = vmatpush1.msra.mxu0 0.0
    %1304 = vmatprep.subr.mxu0 0.0
    %1305 = vmatpush1.msra.mxu0 0.0
    %1306 = vmatprep.subr.mxu0 0.0
    %1307 = vmatpush1.msra.mxu0 0.0
    %1308 = vmatprep.subr.mxu0 0.0
    %1309 = vmatpush1.msra.mxu0 0.0
    %1310 = vmatprep.subr.mxu0 0.0
    %1311 = vmatpush1.msra.mxu0 0.0
    %1312 = vmatprep.subr.mxu0 0.0
    %1313 = vmatpush1.msra.mxu0 0.0
    %1314 = vmatprep.subr.mxu0 0.0
    %1315 = vmatpush1.msra.mxu0 0.0
    %1316 = vmatprep.subr.mxu0 0.0
    %1317 = vmatpush1.msra.mxu0 0.0
    %1318 = vmatprep.subr.mxu0 0.0
    %1319 = vmatpush1.msra.mxu0 0.0
    %1320 = vmatprep.subr.mxu0 0.0
    %1321 = vmatpush1.msra.mxu0 %v1283
    %1322 = vmatprep.subr.mxu0 0.0
    %1323 = vmatpush2.msra.mxu0 0.0
    %1324 = vmatprep.subr.mxu0 0.0
    %1325 = vmatpush2.msra.mxu0 0.0
    %1326 = vmatprep.subr.mxu0 0.0
    %1327 = vmatpush2.msra.mxu0 0.0
    %1328 = vmatprep.subr.mxu0 0.0
    %1329 = vmatpush2.msra.mxu0 0.0
    %1330 = vmatprep.subr.mxu0 0.0
    %1331 = vmatpush2.msra.mxu0 0.0
    %1332 = vmatprep.subr.mxu0 0.0
    %1333 = vmatpush2.msra.mxu0 0.0
    %1334 = vmatprep.subr.mxu0 0.0
    %1335 = vmatpush2.msra.mxu0 0.0
    %1336 = vmatprep.subr.mxu0 0.0
    %1337 = vmatpush2.msra.mxu0 0.0
    %1338 = vmatprep.subr.mxu0 0.0
    %1339 = vmatpush2.msra.mxu0 0.0
    %1340 = vmatprep.subr.mxu0 0.0
    %1341 = vmatpush2.msra.mxu0 0.0
    %1342 = vmatprep.subr.mxu0 0.0
    %1343 = vmatpush2.msra.mxu0 0.0
    %1344 = vmatprep.subr.mxu0 0.0
    %1345 = vmatpush2.msra.mxu0 0.0
    %1346 = vmatprep.subr.mxu0 0.0
    %1347 = vmatpush2.msra.mxu0 0.0
    %1348 = vmatprep.subr.mxu0 0.0
    %1349 = vmatpush2.msra.mxu0 0.0
    %1350 = vmatprep.subr.mxu0 0.0
    %1351 = vmatpush2.msra.mxu0 0.0
    %1352 = vmatprep.subr.mxu0 0.0
    %1353 = vmatpush2.msra.mxu0 0.0
    %1354 = vmatprep.mubr.f32.mxu0 0.0
    %1355 = vmatmul.mubr.f32.gmra.mxu0 %v1285
    %v1356 = vpop.f32.mrf.mxu0
    %v1357 = vadd.f32 0.0, %v1356
    %v1358 = vpop.f32.mrf.mxu0
    %1359 = vmatprep.mubr.f32.mxu0 0.0
    %1360 = vmatmul.mubr.f32.gmra.mxu0 %v1288
    %v1361 = vpop.f32.mrf.mxu0
    %v1362 = vadd.f32 0.0, %v1361
    %v1363 = vpop.f32.mrf.mxu0
    %1364 = vdwg.mxu0
    %v1365 = vadd.f32 %v945, %v1357
    %v1366 = vadd.f32 %v950, %v1362
    %1367 = vrot.lane.b32.xlu0 %v122, 104
    %v1368 = vpop.permute.xlu0 %1367
    %1369 = vrot.lane.b32.xlu0 %v122, 72
    %v1370 = vpop.permute.xlu0 %1369
    %v1371 = vsel %vm133, %v1368, 0
    %v1373 = vsel %vm133, %v1370, 0
    %1375 = vmatprep.subr.mxu0 0.0
    %1376 = vmatpush1.xpose.msra.mxu0 0.0
    %1377 = vmatprep.subr.mxu0 0.0
    %1378 = vmatpush1.xpose.msra.mxu0 0.0
    %1379 = vmatprep.subr.mxu0 0.0
    %1380 = vmatpush1.xpose.msra.mxu0 0.0
    %1381 = vmatprep.subr.mxu0 0.0
    %1382 = vmatpush1.xpose.msra.mxu0 0.0
    %1383 = vmatprep.subr.mxu0 0.0
    %1384 = vmatpush1.xpose.msra.mxu0 0.0
    %1385 = vmatprep.subr.mxu0 0.0
    %1386 = vmatpush1.xpose.msra.mxu0 0.0
    %1387 = vmatprep.subr.mxu0 0.0
    %1388 = vmatpush1.xpose.msra.mxu0 0.0
    %1389 = vmatprep.subr.mxu0 0.0
    %1390 = vmatpush1.xpose.msra.mxu0 0.0
    %1391 = vmatprep.subr.mxu0 0.0
    %1392 = vmatpush1.xpose.msra.mxu0 0.0
    %1393 = vmatprep.subr.mxu0 0.0
    %1394 = vmatpush1.xpose.msra.mxu0 0.0
    %1395 = vmatprep.subr.mxu0 0.0
    %1396 = vmatpush1.xpose.msra.mxu0 0.0
    %1397 = vmatprep.subr.mxu0 0.0
    %1398 = vmatpush1.xpose.msra.mxu0 0.0
    %1399 = vmatprep.subr.mxu0 0.0
    %1400 = vmatpush1.xpose.msra.mxu0 0.0
    %1401 = vmatprep.subr.mxu0 0.0
    %1402 = vmatpush1.xpose.msra.mxu0 0.0
    %1403 = vmatprep.subr.mxu0 0.0
    %1404 = vmatpush1.xpose.msra.mxu0 0.0
    %1405 = vmatprep.subr.mxu0 0.0
    %1406 = vmatpush1.xpose.msra.mxu0 %v1373
    %1407 = vmatprep.subr.mxu0 0.0
    %1408 = vmatpush2.xpose.msra.mxu0 0.0
    %1409 = vmatprep.subr.mxu0 0.0
    %1410 = vmatpush2.xpose.msra.mxu0 0.0
    %1411 = vmatprep.subr.mxu0 0.0
    %1412 = vmatpush2.xpose.msra.mxu0 0.0
    %1413 = vmatprep.subr.mxu0 0.0
    %1414 = vmatpush2.xpose.msra.mxu0 0.0
    %1415 = vmatprep.subr.mxu0 0.0
    %1416 = vmatpush2.xpose.msra.mxu0 0.0
    %1417 = vmatprep.subr.mxu0 0.0
    %1418 = vmatpush2.xpose.msra.mxu0 0.0
    %1419 = vmatprep.subr.mxu0 0.0
    %1420 = vmatpush2.xpose.msra.mxu0 0.0
    %1421 = vmatprep.subr.mxu0 0.0
    %1422 = vmatpush2.xpose.msra.mxu0 0.0
    %1423 = vmatprep.subr.mxu0 0.0
    %1424 = vmatpush2.xpose.msra.mxu0 0.0
    %1425 = vmatprep.subr.mxu0 0.0
    %1426 = vmatpush2.xpose.msra.mxu0 0.0
    %1427 = vmatprep.subr.mxu0 0.0
    %1428 = vmatpush2.xpose.msra.mxu0 0.0
    %1429 = vmatprep.subr.mxu0 0.0
    %1430 = vmatpush2.xpose.msra.mxu0 0.0
    %1431 = vmatprep.subr.mxu0 0.0
    %1432 = vmatpush2.xpose.msra.mxu0 0.0
    %1433 = vmatprep.subr.mxu0 0.0
    %1434 = vmatpush2.xpose.msra.mxu0 0.0
    %1435 = vmatprep.subr.mxu0 0.0
    %1436 = vmatpush2.xpose.msra.mxu0 0.0
    %1437 = vmatprep.subr.mxu0 0.0
    %1438 = vmatpush2.xpose.msra.mxu0 0.0
    %1439 = vmatprep.mubr.f32.mxu0 0.0
    %1440 = vmatmul.mubr.f32.gmra.mxu0 %v1371
    %v1441 = vpop.f32.mrf.mxu0
    %v1442 = vadd.f32 0.0, %v1441
    %v1443 = vpop.f32.mrf.mxu0
    %1444 = vdwg.mxu0
    %1445 = vrot.lane.b32.xlu0 %v127, 104
    %v1446 = vpop.permute.xlu0 %1445
    %1447 = vrot.lane.b32.xlu0 %v127, 72
    %v1448 = vpop.permute.xlu0 %1447
    %v1449 = vsel %vm133, %v1446, 0
    %v1451 = vsel %vm133, %v1448, 0
    %1453 = vmatprep.subr.mxu0 0.0
    %1454 = vmatpush1.xpose.msra.mxu0 0.0
    %1455 = vmatprep.subr.mxu0 0.0
    %1456 = vmatpush1.xpose.msra.mxu0 0.0
    %1457 = vmatprep.subr.mxu0 0.0
    %1458 = vmatpush1.xpose.msra.mxu0 0.0
    %1459 = vmatprep.subr.mxu0 0.0
    %1460 = vmatpush1.xpose.msra.mxu0 0.0
    %1461 = vmatprep.subr.mxu0 0.0
    %1462 = vmatpush1.xpose.msra.mxu0 0.0
    %1463 = vmatprep.subr.mxu0 0.0
    %1464 = vmatpush1.xpose.msra.mxu0 0.0
    %1465 = vmatprep.subr.mxu0 0.0
    %1466 = vmatpush1.xpose.msra.mxu0 0.0
    %1467 = vmatprep.subr.mxu0 0.0
    %1468 = vmatpush1.xpose.msra.mxu0 0.0
    %1469 = vmatprep.subr.mxu0 0.0
    %1470 = vmatpush1.xpose.msra.mxu0 0.0
    %1471 = vmatprep.subr.mxu0 0.0
    %1472 = vmatpush1.xpose.msra.mxu0 0.0
    %1473 = vmatprep.subr.mxu0 0.0
    %1474 = vmatpush1.xpose.msra.mxu0 0.0
    %1475 = vmatprep.subr.mxu0 0.0
    %1476 = vmatpush1.xpose.msra.mxu0 0.0
    %1477 = vmatprep.subr.mxu0 0.0
    %1478 = vmatpush1.xpose.msra.mxu0 0.0
    %1479 = vmatprep.subr.mxu0 0.0
    %1480 = vmatpush1.xpose.msra.mxu0 0.0
    %1481 = vmatprep.subr.mxu0 0.0
    %1482 = vmatpush1.xpose.msra.mxu0 0.0
    %1483 = vmatprep.subr.mxu0 0.0
    %1484 = vmatpush1.xpose.msra.mxu0 %v1451
    %1485 = vmatprep.subr.mxu0 0.0
    %1486 = vmatpush2.xpose.msra.mxu0 0.0
    %1487 = vmatprep.subr.mxu0 0.0
    %1488 = vmatpush2.xpose.msra.mxu0 0.0
    %1489 = vmatprep.subr.mxu0 0.0
    %1490 = vmatpush2.xpose.msra.mxu0 0.0
    %1491 = vmatprep.subr.mxu0 0.0
    %1492 = vmatpush2.xpose.msra.mxu0 0.0
    %1493 = vmatprep.subr.mxu0 0.0
    %1494 = vmatpush2.xpose.msra.mxu0 0.0
    %1495 = vmatprep.subr.mxu0 0.0
    %1496 = vmatpush2.xpose.msra.mxu0 0.0
    %1497 = vmatprep.subr.mxu0 0.0
    %1498 = vmatpush2.xpose.msra.mxu0 0.0
    %1499 = vmatprep.subr.mxu0 0.0
    %1500 = vmatpush2.xpose.msra.mxu0 0.0
    %1501 = vmatprep.subr.mxu0 0.0
    %1502 = vmatpush2.xpose.msra.mxu0 0.0
    %1503 = vmatprep.subr.mxu0 0.0
    %1504 = vmatpush2.xpose.msra.mxu0 0.0
    %1505 = vmatprep.subr.mxu0 0.0
    %1506 = vmatpush2.xpose.msra.mxu0 0.0
    %1507 = vmatprep.subr.mxu0 0.0
    %1508 = vmatpush2.xpose.msra.mxu0 0.0
    %1509 = vmatprep.subr.mxu0 0.0
    %1510 = vmatpush2.xpose.msra.mxu0 0.0
    %1511 = vmatprep.subr.mxu0 0.0
    %1512 = vmatpush2.xpose.msra.mxu0 0.0
    %1513 = vmatprep.subr.mxu0 0.0
    %1514 = vmatpush2.xpose.msra.mxu0 0.0
    %1515 = vmatprep.subr.mxu0 0.0
    %1516 = vmatpush2.xpose.msra.mxu0 0.0
    %1517 = vmatprep.mubr.f32.mxu0 0.0
    %1518 = vmatmul.mubr.f32.gmra.mxu0 %v1449
    %v1519 = vpop.f32.mrf.mxu0
    %v1520 = vadd.f32 0.0, %v1519
    %v1521 = vpop.f32.mrf.mxu0
    %1522 = vdwg.mxu0
    %v1523 = vsel %vm133, %v1442, -inf
    %1524 = vmax.xlane.f32.xlu0 %v1523
    %v1525 = vpop.xlane.xlu0 %1524
    %v1526 = vsel %vm133, %v1520, -inf
    %1527 = vmax.xlane.f32.xlu0 %v1526
    %v1528 = vpop.xlane.xlu0 %1527
    %v1529 = vsub.f32 %v1442, %v1525
    %v1530 = vsub.f32 %v1520, %v1528
    %v1531 = vmul.f32 %v1529, 1.442695
    %v1532 = vpow.pop %v1531
    %v1533 = vmul.f32 %v1530, 1.442695
    %v1534 = vpow.pop %v1533
    %v1535 = vsel %vm133, %v1532, 0.0
    %1536 = vadd.xlane.f32.xlu0 %v1535
    %v1537 = vpop.xlane.xlu0 %1536
    %v1538 = vsel %vm133, %v1534, 0.0
    %1539 = vadd.xlane.f32.xlu0 %v1538
    %v1540 = vpop.xlane.xlu0 %1539
    %v1541 = vrcp.pop %v1537
    %v1542 = vrcp.pop %v1540
    %v1543 = vmul.f32 %v1532, %v1541
    %v1544 = vmul.f32 %v1534, %v1542
    %1545 = vrot.lane.b32.xlu0 %v122, 40
    %v1546 = vpop.permute.xlu0 %1545
    %v1549 = vsel %vm133, %v1543, 0
    %1551 = vmatprep.subr.mxu0 0.0
    %1552 = vmatpush1.msra.mxu0 0.0
    %1553 = vmatprep.subr.mxu0 0.0
    %1554 = vmatpush1.msra.mxu0 0.0
    %1555 = vmatprep.subr.mxu0 0.0
    %1556 = vmatpush1.msra.mxu0 0.0
    %1557 = vmatprep.subr.mxu0 0.0
    %1558 = vmatpush1.msra.mxu0 0.0
    %1559 = vmatprep.subr.mxu0 0.0
    %1560 = vmatpush1.msra.mxu0 0.0
    %1561 = vmatprep.subr.mxu0 0.0
    %1562 = vmatpush1.msra.mxu0 0.0
    %1563 = vmatprep.subr.mxu0 0.0
    %1564 = vmatpush1.msra.mxu0 0.0
    %1565 = vmatprep.subr.mxu0 0.0
    %1566 = vmatpush1.msra.mxu0 0.0
    %1567 = vmatprep.subr.mxu0 0.0
    %1568 = vmatpush1.msra.mxu0 0.0
    %1569 = vmatprep.subr.mxu0 0.0
    %1570 = vmatpush1.msra.mxu0 0.0
    %1571 = vmatprep.subr.mxu0 0.0
    %1572 = vmatpush1.msra.mxu0 0.0
    %1573 = vmatprep.subr.mxu0 0.0
    %1574 = vmatpush1.msra.mxu0 0.0
    %1575 = vmatprep.subr.mxu0 0.0
    %1576 = vmatpush1.msra.mxu0 0.0
    %1577 = vmatprep.subr.mxu0 0.0
    %1578 = vmatpush1.msra.mxu0 0.0
    %1579 = vmatprep.subr.mxu0 0.0
    %1580 = vmatpush1.msra.mxu0 0.0
    %1581 = vmatprep.subr.mxu0 0.0
    %1582 = vmatpush1.msra.mxu0 %v1546
    %1583 = vmatprep.subr.mxu0 0.0
    %1584 = vmatpush2.msra.mxu0 0.0
    %1585 = vmatprep.subr.mxu0 0.0
    %1586 = vmatpush2.msra.mxu0 0.0
    %1587 = vmatprep.subr.mxu0 0.0
    %1588 = vmatpush2.msra.mxu0 0.0
    %1589 = vmatprep.subr.mxu0 0.0
    %1590 = vmatpush2.msra.mxu0 0.0
    %1591 = vmatprep.subr.mxu0 0.0
    %1592 = vmatpush2.msra.mxu0 0.0
    %1593 = vmatprep.subr.mxu0 0.0
    %1594 = vmatpush2.msra.mxu0 0.0
    %1595 = vmatprep.subr.mxu0 0.0
    %1596 = vmatpush2.msra.mxu0 0.0
    %1597 = vmatprep.subr.mxu0 0.0
    %1598 = vmatpush2.msra.mxu0 0.0
    %1599 = vmatprep.subr.mxu0 0.0
    %1600 = vmatpush2.msra.mxu0 0.0
    %1601 = vmatprep.subr.mxu0 0.0
    %1602 = vmatpush2.msra.mxu0 0.0
    %1603 = vmatprep.subr.mxu0 0.0
    %1604 = vmatpush2.msra.mxu0 0.0
    %1605 = vmatprep.subr.mxu0 0.0
    %1606 = vmatpush2.msra.mxu0 0.0
    %1607 = vmatprep.subr.mxu0 0.0
    %1608 = vmatpush2.msra.mxu0 0.0
    %1609 = vmatprep.subr.mxu0 0.0
    %1610 = vmatpush2.msra.mxu0 0.0
    %1611 = vmatprep.subr.mxu0 0.0
    %1612 = vmatpush2.msra.mxu0 0.0
    %1613 = vmatprep.subr.mxu0 0.0
    %1614 = vmatpush2.msra.mxu0 0.0
    %1615 = vmatprep.mubr.f32.mxu0 0.0
    %1616 = vmatmul.mubr.f32.gmra.mxu0 %v1549
    %v1617 = vpop.f32.mrf.mxu0
    %v1618 = vadd.f32 0.0, %v1617
    %v1619 = vpop.f32.mrf.mxu0
    %1620 = vdwg.mxu0
    %1621 = vrot.lane.b32.xlu0 %v127, 40
    %v1622 = vpop.permute.xlu0 %1621
    %v1625 = vsel %vm133, %v1544, 0
    %1627 = vmatprep.subr.mxu0 0.0
    %1628 = vmatpush1.msra.mxu0 0.0
    %1629 = vmatprep.subr.mxu0 0.0
    %1630 = vmatpush1.msra.mxu0 0.0
    %1631 = vmatprep.subr.mxu0 0.0
    %1632 = vmatpush1.msra.mxu0 0.0
    %1633 = vmatprep.subr.mxu0 0.0
    %1634 = vmatpush1.msra.mxu0 0.0
    %1635 = vmatprep.subr.mxu0 0.0
    %1636 = vmatpush1.msra.mxu0 0.0
    %1637 = vmatprep.subr.mxu0 0.0
    %1638 = vmatpush1.msra.mxu0 0.0
    %1639 = vmatprep.subr.mxu0 0.0
    %1640 = vmatpush1.msra.mxu0 0.0
    %1641 = vmatprep.subr.mxu0 0.0
    %1642 = vmatpush1.msra.mxu0 0.0
    %1643 = vmatprep.subr.mxu0 0.0
    %1644 = vmatpush1.msra.mxu0 0.0
    %1645 = vmatprep.subr.mxu0 0.0
    %1646 = vmatpush1.msra.mxu0 0.0
    %1647 = vmatprep.subr.mxu0 0.0
    %1648 = vmatpush1.msra.mxu0 0.0
    %1649 = vmatprep.subr.mxu0 0.0
    %1650 = vmatpush1.msra.mxu0 0.0
    %1651 = vmatprep.subr.mxu0 0.0
    %1652 = vmatpush1.msra.mxu0 0.0
    %1653 = vmatprep.subr.mxu0 0.0
    %1654 = vmatpush1.msra.mxu0 0.0
    %1655 = vmatprep.subr.mxu0 0.0
    %1656 = vmatpush1.msra.mxu0 0.0
    %1657 = vmatprep.subr.mxu0 0.0
    %1658 = vmatpush1.msra.mxu0 %v1622
    %1659 = vmatprep.subr.mxu0 0.0
    %1660 = vmatpush2.msra.mxu0 0.0
    %1661 = vmatprep.subr.mxu0 0.0
    %1662 = vmatpush2.msra.mxu0 0.0
    %1663 = vmatprep.subr.mxu0 0.0
    %1664 = vmatpush2.msra.mxu0 0.0
    %1665 = vmatprep.subr.mxu0 0.0
    %1666 = vmatpush2.msra.mxu0 0.0
    %1667 = vmatprep.subr.mxu0 0.0
    %1668 = vmatpush2.msra.mxu0 0.0
    %1669 = vmatprep.subr.mxu0 0.0
    %1670 = vmatpush2.msra.mxu0 0.0
    %1671 = vmatprep.subr.mxu0 0.0
    %1672 = vmatpush2.msra.mxu0 0.0
    %1673 = vmatprep.subr.mxu0 0.0
    %1674 = vmatpush2.msra.mxu0 0.0
    %1675 = vmatprep.subr.mxu0 0.0
    %1676 = vmatpush2.msra.mxu0 0.0
    %1677 = vmatprep.subr.mxu0 0.0
    %1678 = vmatpush2.msra.mxu0 0.0
    %1679 = vmatprep.subr.mxu0 0.0
    %1680 = vmatpush2.msra.mxu0 0.0
    %1681 = vmatprep.subr.mxu0 0.0
    %1682 = vmatpush2.msra.mxu0 0.0
    %1683 = vmatprep.subr.mxu0 0.0
    %1684 = vmatpush2.msra.mxu0 0.0
    %1685 = vmatprep.subr.mxu0 0.0
    %1686 = vmatpush2.msra.mxu0 0.0
    %1687 = vmatprep.subr.mxu0 0.0
    %1688 = vmatpush2.msra.mxu0 0.0
    %1689 = vmatprep.subr.mxu0 0.0
    %1690 = vmatpush2.msra.mxu0 0.0
    %1691 = vmatprep.mubr.f32.mxu0 0.0
    %1692 = vmatmul.mubr.f32.gmra.mxu0 %v1625
    %v1693 = vpop.f32.mrf.mxu0
    %v1694 = vadd.f32 0.0, %v1693
    %v1695 = vpop.f32.mrf.mxu0
    %1696 = vdwg.mxu0
    %v1697 = vld [vmem:[%s2 + $0x18] sm:$0xff]
    %v1699 = vsel %vm133, %v1618, 0
    %v1702 = vsel %vm133, %v1694, 0
    %1704 = vmatprep.subr.mxu0 0.0
    %1705 = vmatpush1.msra.mxu0 0.0
    %1706 = vmatprep.subr.mxu0 0.0
    %1707 = vmatpush1.msra.mxu0 0.0
    %1708 = vmatprep.subr.mxu0 0.0
    %1709 = vmatpush1.msra.mxu0 0.0
    %1710 = vmatprep.subr.mxu0 0.0
    %1711 = vmatpush1.msra.mxu0 0.0
    %1712 = vmatprep.subr.mxu0 0.0
    %1713 = vmatpush1.msra.mxu0 0.0
    %1714 = vmatprep.subr.mxu0 0.0
    %1715 = vmatpush1.msra.mxu0 0.0
    %1716 = vmatprep.subr.mxu0 0.0
    %1717 = vmatpush1.msra.mxu0 0.0
    %1718 = vmatprep.subr.mxu0 0.0
    %1719 = vmatpush1.msra.mxu0 0.0
    %1720 = vmatprep.subr.mxu0 0.0
    %1721 = vmatpush1.msra.mxu0 0.0
    %1722 = vmatprep.subr.mxu0 0.0
    %1723 = vmatpush1.msra.mxu0 0.0
    %1724 = vmatprep.subr.mxu0 0.0
    %1725 = vmatpush1.msra.mxu0 0.0
    %1726 = vmatprep.subr.mxu0 0.0
    %1727 = vmatpush1.msra.mxu0 0.0
    %1728 = vmatprep.subr.mxu0 0.0
    %1729 = vmatpush1.msra.mxu0 0.0
    %1730 = vmatprep.subr.mxu0 0.0
    %1731 = vmatpush1.msra.mxu0 0.0
    %1732 = vmatprep.subr.mxu0 0.0
    %1733 = vmatpush1.msra.mxu0 0.0
    %1734 = vmatprep.subr.mxu0 0.0
    %1735 = vmatpush1.msra.mxu0 %v1697
    %1736 = vmatprep.subr.mxu0 0.0
    %1737 = vmatpush2.msra.mxu0 0.0
    %1738 = vmatprep.subr.mxu0 0.0
    %1739 = vmatpush2.msra.mxu0 0.0
    %1740 = vmatprep.subr.mxu0 0.0
    %1741 = vmatpush2.msra.mxu0 0.0
    %1742 = vmatprep.subr.mxu0 0.0
    %1743 = vmatpush2.msra.mxu0 0.0
    %1744 = vmatprep.subr.mxu0 0.0
    %1745 = vmatpush2.msra.mxu0 0.0
    %1746 = vmatprep.subr.mxu0 0.0
    %1747 = vmatpush2.msra.mxu0 0.0
    %1748 = vmatprep.subr.mxu0 0.0
    %1749 = vmatpush2.msra.mxu0 0.0
    %1750 = vmatprep.subr.mxu0 0.0
    %1751 = vmatpush2.msra.mxu0 0.0
    %1752 = vmatprep.subr.mxu0 0.0
    %1753 = vmatpush2.msra.mxu0 0.0
    %1754 = vmatprep.subr.mxu0 0.0
    %1755 = vmatpush2.msra.mxu0 0.0
    %1756 = vmatprep.subr.mxu0 0.0
    %1757 = vmatpush2.msra.mxu0 0.0
    %1758 = vmatprep.subr.mxu0 0.0
    %1759 = vmatpush2.msra.mxu0 0.0
    %1760 = vmatprep.subr.mxu0 0.0
    %1761 = vmatpush2.msra.mxu0 0.0
    %1762 = vmatprep.subr.mxu0 0.0
    %1763 = vmatpush2.msra.mxu0 0.0
    %1764 = vmatprep.subr.mxu0 0.0
    %1765 = vmatpush2.msra.mxu0 0.0
    %1766 = vmatprep.subr.mxu0 0.0
    %1767 = vmatpush2.msra.mxu0 0.0
    %1768 = vmatprep.mubr.f32.mxu0 0.0
    %1769 = vmatmul.mubr.f32.gmra.mxu0 %v1699
    %v1770 = vpop.f32.mrf.mxu0
    %v1771 = vadd.f32 0.0, %v1770
    %v1772 = vpop.f32.mrf.mxu0
    %1773 = vmatprep.mubr.f32.mxu0 0.0
    %1774 = vmatmul.mubr.f32.gmra.mxu0 %v1702
    %v1775 = vpop.f32.mrf.mxu0
    %v1776 = vadd.f32 0.0, %v1775
    %v1777 = vpop.f32.mrf.mxu0
    %1778 = vdwg.mxu0
    %v1779 = vadd.f32 %v1365, %v1771
    %v1780 = vadd.f32 %v1366, %v1776
    %v1781 = vld [vmem:[%s3] sm:$0x1]
    %v1783 = vlaneseq
    %v1784 = vshrl.u32 %v1783, 7
    %v1785 = vsub.s32 0, %v1784
    %v1786 = vrot.slane %v1781, %v1785
    %v1788 = vadd.f32 %v1779, %v1786
    %v1789 = vadd.f32 %v1780, %v1786
    %v1790 = vadd.f32 %v1788, %v42
    %v1791 = vadd.f32 %v1789, %v43
    %v1792 = vld [vmem:[%s4] sm:$0x1]
    %v1793 = vld [vmem:[%s5] sm:$0x1]
    %v1794 = vsel %vm48, %v1790, 0.0
    %1795 = vadd.xlane.f32.xlu0 %v1794
    %v1796 = vpop.xlane.xlu0 %1795
    %v1797 = vsel %vm48, %v1791, 0.0
    %1798 = vadd.xlane.f32.xlu0 %v1797
    %v1799 = vpop.xlane.xlu0 %1798
    %v1800 = vrcp.pop 32.0
    %v1801 = vmul.f32 %v1796, %v1800
    %v1802 = vmul.f32 %v1799, %v1800
    %v1803 = vsub.f32 %v1790, %v1801
    %v1804 = vsub.f32 %v1791, %v1802
    %v1805 = vmul.f32 %v1803, %v1803
    %v1806 = vmul.f32 %v1804, %v1804
    %v1807 = vsel %vm48, %v1805, 0.0
    %1808 = vadd.xlane.f32.xlu0 %v1807
    %v1809 = vpop.xlane.xlu0 %1808
    %v1810 = vsel %vm48, %v1806, 0.0
    %1811 = vadd.xlane.f32.xlu0 %v1810
    %v1812 = vpop.xlane.xlu0 %1811
    %v1813 = vmul.f32 %v1809, %v1800
    %v1814 = vmul.f32 %v1812, %v1800
    %v1815 = vadd.f32 %v1813, 1e-05
    %v1816 = vadd.f32 %v1814, 1e-05
    %v1817 = vrsqrt.pop %v1815
    %v1818 = vrsqrt.pop %v1816
    %v1819 = vmul.f32 %v1803, %v1817
    %v1820 = vmul.f32 %v1804, %v1818
    %v1822 = vlaneseq
    %v1823 = vshrl.u32 %v1822, 7
    %v1824 = vsub.s32 0, %v1823
    %v1825 = vrot.slane %v1792, %v1824
    %v1827 = vmul.f32 %v1819, %v1825
    %v1828 = vmul.f32 %v1820, %v1825
    %v1830 = vlaneseq
    %v1831 = vshrl.u32 %v1830, 7
    %v1832 = vsub.s32 0, %v1831
    %v1833 = vrot.slane %v1793, %v1832
    %v1835 = vadd.f32 %v1827, %v1833
    %v1836 = vadd.f32 %v1828, %v1833
    %v1837 = vld [vmem:[%s6] sm:$0xff]
    %v1838 = vld [vmem:[%s6 + $0x8] sm:$0xff]
    %v1839 = vld [vmem:[%s6 + $0x10] sm:$0xff]
    %v1840 = vld [vmem:[%s6 + $0x18] sm:$0xff]
    %v1841 = vld [vmem:[%s7] sm:$0x1]
    %v1843 = vlaneseq
    %v1844 = vshrl.u32 %v1843, 7
    %v1845 = vsub.s32 0, %v1844
    %v1846 = vrot.slane %v1841, %v1845
    %v1849 = vsel %vm48, %v1835, 0
    %v1852 = vsel %vm48, %v1836, 0
    %1854 = vmatprep.subr.mxu0 0.0
    %1855 = vmatpush1.msra.mxu0 0.0
    %1856 = vmatprep.subr.mxu0 0.0
    %1857 = vmatpush1.msra.mxu0 0.0
    %1858 = vmatprep.subr.mxu0 0.0
    %1859 = vmatpush1.msra.mxu0 0.0
    %1860 = vmatprep.subr.mxu0 0.0
    %1861 = vmatpush1.msra.mxu0 0.0
    %1862 = vmatprep.subr.mxu0 0.0
    %1863 = vmatpush1.msra.mxu0 0.0
    %1864 = vmatprep.subr.mxu0 0.0
    %1865 = vmatpush1.msra.mxu0 0.0
    %1866 = vmatprep.subr.mxu0 0.0
    %1867 = vmatpush1.msra.mxu0 0.0
    %1868 = vmatprep.subr.mxu0 0.0
    %1869 = vmatpush1.msra.mxu0 0.0
    %1870 = vmatprep.subr.mxu0 0.0
    %1871 = vmatpush1.msra.mxu0 0.0
    %1872 = vmatprep.subr.mxu0 0.0
    %1873 = vmatpush1.msra.mxu0 0.0
    %1874 = vmatprep.subr.mxu0 0.0
    %1875 = vmatpush1.msra.mxu0 0.0
    %1876 = vmatprep.subr.mxu0 0.0
    %1877 = vmatpush1.msra.mxu0 0.0
    %1878 = vmatprep.subr.mxu0 0.0
    %1879 = vmatpush1.msra.mxu0 %v1840
    %1880 = vmatprep.subr.mxu0 0.0
    %1881 = vmatpush1.msra.mxu0 %v1839
    %1882 = vmatprep.subr.mxu0 0.0
    %1883 = vmatpush1.msra.mxu0 %v1838
    %1884 = vmatprep.subr.mxu0 0.0
    %1885 = vmatpush1.msra.mxu0 %v1837
    %1886 = vmatprep.subr.mxu0 0.0
    %1887 = vmatpush2.msra.mxu0 0.0
    %1888 = vmatprep.subr.mxu0 0.0
    %1889 = vmatpush2.msra.mxu0 0.0
    %1890 = vmatprep.subr.mxu0 0.0
    %1891 = vmatpush2.msra.mxu0 0.0
    %1892 = vmatprep.subr.mxu0 0.0
    %1893 = vmatpush2.msra.mxu0 0.0
    %1894 = vmatprep.subr.mxu0 0.0
    %1895 = vmatpush2.msra.mxu0 0.0
    %1896 = vmatprep.subr.mxu0 0.0
    %1897 = vmatpush2.msra.mxu0 0.0
    %1898 = vmatprep.subr.mxu0 0.0
    %1899 = vmatpush2.msra.mxu0 0.0
    %1900 = vmatprep.subr.mxu0 0.0
    %1901 = vmatpush2.msra.mxu0 0.0
    %1902 = vmatprep.subr.mxu0 0.0
    %1903 = vmatpush2.msra.mxu0 0.0
    %1904 = vmatprep.subr.mxu0 0.0
    %1905 = vmatpush2.msra.mxu0 0.0
    %1906 = vmatprep.subr.mxu0 0.0
    %1907 = vmatpush2.msra.mxu0 0.0
    %1908 = vmatprep.subr.mxu0 0.0
    %1909 = vmatpush2.msra.mxu0 0.0
    %1910 = vmatprep.subr.mxu0 0.0
    %1911 = vmatpush2.msra.mxu0 0.0
    %1912 = vmatprep.subr.mxu0 0.0
    %1913 = vmatpush2.msra.mxu0 0.0
    %1914 = vmatprep.subr.mxu0 0.0
    %1915 = vmatpush2.msra.mxu0 0.0
    %1916 = vmatprep.subr.mxu0 0.0
    %1917 = vmatpush2.msra.mxu0 0.0
    %1918 = vmatprep.mubr.f32.mxu0 0.0
    %1919 = vmatmul.mubr.f32.gmra.mxu0 %v1849
    %v1920 = vpop.f32.mrf.mxu0
    %v1921 = vadd.f32 %v1846, %v1920
    %v1922 = vpop.f32.mrf.mxu0
    %1923 = vmatprep.mubr.f32.mxu0 0.0
    %1924 = vmatmul.mubr.f32.gmra.mxu0 %v1852
    %v1925 = vpop.f32.mrf.mxu0
    %v1926 = vadd.f32 %v1846, %v1925
    %v1927 = vpop.f32.mrf.mxu0
    %1928 = vdwg.mxu0
    %v1929 = vmax.f32 %v1921, 0.0
    %v1930 = vmax.f32 %v1926, 0.0
    %v1931 = vld [vmem:[%s8] sm:$0xff]
    %v1932 = vld [vmem:[%s8 + $0x8] sm:$0xff]
    %v1933 = vld [vmem:[%s8 + $0x10] sm:$0xff]
    %v1934 = vld [vmem:[%s8 + $0x18] sm:$0xff]
    %v1935 = vld [vmem:[%s8 + $0x20] sm:$0xff]
    %v1936 = vld [vmem:[%s8 + $0x28] sm:$0xff]
    %v1937 = vld [vmem:[%s8 + $0x30] sm:$0xff]
    %v1938 = vld [vmem:[%s8 + $0x38] sm:$0xff]
    %v1939 = vld [vmem:[%s8 + $0x40] sm:$0xff]
    %v1940 = vld [vmem:[%s8 + $0x48] sm:$0xff]
    %v1941 = vld [vmem:[%s8 + $0x50] sm:$0xff]
    %v1942 = vld [vmem:[%s8 + $0x58] sm:$0xff]
    %v1943 = vld [vmem:[%s8 + $0x60] sm:$0xff]
    %v1944 = vld [vmem:[%s8 + $0x68] sm:$0xff]
    %v1945 = vld [vmem:[%s8 + $0x70] sm:$0xff]
    %v1946 = vld [vmem:[%s8 + $0x78] sm:$0xff]
    %v1947 = vld [vmem:[%s9] sm:$0x1]
    %v1949 = vlaneseq
    %v1950 = vshrl.u32 %v1949, 7
    %v1951 = vsub.s32 0, %v1950
    %v1952 = vrot.slane %v1947, %v1951
    %1954 = vmatprep.subr.mxu0 0.0
    %1955 = vmatpush1.msra.mxu0 %v1946
    %1956 = vmatprep.subr.mxu0 0.0
    %1957 = vmatpush1.msra.mxu0 %v1945
    %1958 = vmatprep.subr.mxu0 0.0
    %1959 = vmatpush1.msra.mxu0 %v1944
    %1960 = vmatprep.subr.mxu0 0.0
    %1961 = vmatpush1.msra.mxu0 %v1943
    %1962 = vmatprep.subr.mxu0 0.0
    %1963 = vmatpush1.msra.mxu0 %v1942
    %1964 = vmatprep.subr.mxu0 0.0
    %1965 = vmatpush1.msra.mxu0 %v1941
    %1966 = vmatprep.subr.mxu0 0.0
    %1967 = vmatpush1.msra.mxu0 %v1940
    %1968 = vmatprep.subr.mxu0 0.0
    %1969 = vmatpush1.msra.mxu0 %v1939
    %1970 = vmatprep.subr.mxu0 0.0
    %1971 = vmatpush1.msra.mxu0 %v1938
    %1972 = vmatprep.subr.mxu0 0.0
    %1973 = vmatpush1.msra.mxu0 %v1937
    %1974 = vmatprep.subr.mxu0 0.0
    %1975 = vmatpush1.msra.mxu0 %v1936
    %1976 = vmatprep.subr.mxu0 0.0
    %1977 = vmatpush1.msra.mxu0 %v1935
    %1978 = vmatprep.subr.mxu0 0.0
    %1979 = vmatpush1.msra.mxu0 %v1934
    %1980 = vmatprep.subr.mxu0 0.0
    %1981 = vmatpush1.msra.mxu0 %v1933
    %1982 = vmatprep.subr.mxu0 0.0
    %1983 = vmatpush1.msra.mxu0 %v1932
    %1984 = vmatprep.subr.mxu0 0.0
    %1985 = vmatpush1.msra.mxu0 %v1931
    %1986 = vmatprep.subr.mxu0 0.0
    %1987 = vmatpush2.msra.mxu0 0.0
    %1988 = vmatprep.subr.mxu0 0.0
    %1989 = vmatpush2.msra.mxu0 0.0
    %1990 = vmatprep.subr.mxu0 0.0
    %1991 = vmatpush2.msra.mxu0 0.0
    %1992 = vmatprep.subr.mxu0 0.0
    %1993 = vmatpush2.msra.mxu0 0.0
    %1994 = vmatprep.subr.mxu0 0.0
    %1995 = vmatpush2.msra.mxu0 0.0
    %1996 = vmatprep.subr.mxu0 0.0
    %1997 = vmatpush2.msra.mxu0 0.0
    %1998 = vmatprep.subr.mxu0 0.0
    %1999 = vmatpush2.msra.mxu0 0.0
    %2000 = vmatprep.subr.mxu0 0.0
    %2001 = vmatpush2.msra.mxu0 0.0
    %2002 = vmatprep.subr.mxu0 0.0
    %2003 = vmatpush2.msra.mxu0 0.0
    %2004 = vmatprep.subr.mxu0 0.0
    %2005 = vmatpush2.msra.mxu0 0.0
    %2006 = vmatprep.subr.mxu0 0.0
    %2007 = vmatpush2.msra.mxu0 0.0
    %2008 = vmatprep.subr.mxu0 0.0
    %2009 = vmatpush2.msra.mxu0 0.0
    %2010 = vmatprep.subr.mxu0 0.0
    %2011 = vmatpush2.msra.mxu0 0.0
    %2012 = vmatprep.subr.mxu0 0.0
    %2013 = vmatpush2.msra.mxu0 0.0
    %2014 = vmatprep.subr.mxu0 0.0
    %2015 = vmatpush2.msra.mxu0 0.0
    %2016 = vmatprep.subr.mxu0 0.0
    %2017 = vmatpush2.msra.mxu0 0.0
    %2018 = vmatprep.mubr.f32.mxu0 0.0
    %2019 = vmatmul.mubr.f32.gmra.mxu0 %v1929
    %v2020 = vpop.f32.mrf.mxu0
    %v2021 = vadd.f32 %v1952, %v2020
    %v2022 = vpop.f32.mrf.mxu0
    %2023 = vmatprep.mubr.f32.mxu0 0.0
    %2024 = vmatmul.mubr.f32.gmra.mxu0 %v1930
    %v2025 = vpop.f32.mrf.mxu0
    %v2026 = vadd.f32 %v1952, %v2025
    %v2027 = vpop.f32.mrf.mxu0
    %2028 = vdwg.mxu0
    %v2029 = vadd.f32 %v2021, %v1835
    %v2030 = vadd.f32 %v2026, %v1836
    %v2031 = vld [vmem:[%s10] sm:$0x1]
    %v2032 = vld [vmem:[%s11] sm:$0x1]
    %v2033 = vsel %vm48, %v2029, 0.0
    %2034 = vadd.xlane.f32.xlu0 %v2033
    %v2035 = vpop.xlane.xlu0 %2034
    %v2036 = vsel %vm48, %v2030, 0.0
    %2037 = vadd.xlane.f32.xlu0 %v2036
    %v2038 = vpop.xlane.xlu0 %2037
    %v2039 = vmul.f32 %v2035, %v1800
    %v2040 = vmul.f32 %v2038, %v1800
    %v2041 = vsub.f32 %v2029, %v2039
    %v2042 = vsub.f32 %v2030, %v2040
    %v2043 = vmul.f32 %v2041, %v2041
    %v2044 = vmul.f32 %v2042, %v2042
    %v2045 = vsel %vm48, %v2043, 0.0
    %2046 = vadd.xlane.f32.xlu0 %v2045
    %v2047 = vpop.xlane.xlu0 %2046
    %v2048 = vsel %vm48, %v2044, 0.0
    %2049 = vadd.xlane.f32.xlu0 %v2048
    %v2050 = vpop.xlane.xlu0 %2049
    %v2051 = vmul.f32 %v2047, %v1800
    %v2052 = vmul.f32 %v2050, %v1800
    %v2053 = vadd.f32 %v2051, 1e-05
    %v2054 = vadd.f32 %v2052, 1e-05
    %v2055 = vrsqrt.pop %v2053
    %v2056 = vrsqrt.pop %v2054
    %v2057 = vmul.f32 %v2041, %v2055
    %v2058 = vmul.f32 %v2042, %v2056
    %v2060 = vlaneseq
    %v2061 = vshrl.u32 %v2060, 7
    %v2062 = vsub.s32 0, %v2061
    %v2063 = vrot.slane %v2031, %v2062
    %v2065 = vmul.f32 %v2057, %v2063
    %v2066 = vmul.f32 %v2058, %v2063
    %v2068 = vlaneseq
    %v2069 = vshrl.u32 %v2068, 7
    %v2070 = vsub.s32 0, %v2069
    %v2071 = vrot.slane %v2032, %v2070
    %v2073 = vadd.f32 %v2065, %v2071
    %v2074 = vadd.f32 %v2066, %v2071
    %2075 = vst.msk [vmem:[#allocation2] sm:$0xff] %vm48, %v2073
    %2076 = vst.msk [vmem:[#allocation2 + $0x8] sm:$0xff] %vm48, %v2074
    // Predicated region
    $region50: #{tpu_custom_call.1} parent=1 // pred_check
      _
    $region51: #{tpu_custom_call.1} parent=1 // pred_check_branch
      %2078 = sbr.rel (0) target = $region53
    $region52: #{tpu_custom_call.1} parent=1 // pred_region
      %s2080 = ssub.s32 256, 256
      %2081 = vsyncadd [#allocation3], %s2080
      %s2082 = sshll.u32 [#allocation2], 4
      %s2083 = int_to_ptr.vmem [resolvable:$true] %s2082
      %2088 = dma.vmem_to_hbm [thread:$0]  %s2083, 256, %s12, [#allocation3], 128, 128, 8
    $region53: #{tpu_custom_call.1} parent=1 // pred_fallthru
      _
    // Predicated region
    $region54: #{tpu_custom_call.1} parent=1 // pred_check
      _
    $region55: #{tpu_custom_call.1} parent=1 // pred_check_branch
      %2090 = sbr.rel (0) target = $region57
    $region56: #{tpu_custom_call.1} parent=1 // pred_region
      %2091 = dma.done [#allocation3], 256
    $region57: #{tpu_custom_call.1} parent=1 // pred_fallthru
      _
    %2092 = vsyncpa [#allocation3], 1

</llo_original>
